<compile_context>
chip_gen: v6e
topology: v6e:2x2x1
jax: 0.10.0
libtpu: 0.0.40
codegen_flags: <defaults>
</compile_context>

<pallas_src>
import functools
from collections import namedtuple

import numpy as np

import jax
import jax.numpy as jnp
from jax import lax
from jax.experimental import pallas as pl
from jax.experimental.pallas import tpu as pltpu


TokenPrediction = namedtuple(
    "TokenPrediction",
    ("scores", "aligned_tokens", "utterance_attention_results", "decoder_state"),
)
AttentionResult = namedtuple("AttentionResult", ("scores", "distribution", "vector"))

MAX_ANON = 16                       # max anonymization tokens handled per call
_LANE = 128                         # TPU lane width
_TARGET_TILE_BYTES = 4 * 1024 * 1024   # ~4 MiB bf16 wvoc per tile (2-8 MiB sweet spot)
_VMEM_CAP_BYTES = 48 * 1024 * 1024     # stay well under v7x 64 MiB physical VMEM


def _round_up(x, m):
    return ((x + m - 1) // m) * m


def _cdiv(a, b):
    return (a + b - 1) // b


# ----------------------------------------------------------------------------
# Fused kernel: attention + intermediate state + snippet/anon tail (on the
# first grid step only) and the streamed vocabulary GEMV (every grid step).
# ----------------------------------------------------------------------------
def _fused_kernel(meta_ref, ds_ref, h_ref, wq_ref, wkt_ref, wv_ref, wsd_ref,
                  wsk_ref, wsnip_ref, embt_ref, anon_ref, wvoc_ref, bvoc_ref,
                  vocab_ref, scores_ref, dist_ref, ctx_ref, tail_ref, inter_sc):
    f32 = jnp.float32
    j = pl.program_id(0)

    @pl.when(j == 0)
    def _attention_and_tail():
        l_real = meta_ref[0]                              # real sequence length
        ds = ds_ref[...].astype(f32)                      # (1, Dp)
        h = h_ref[...].astype(f32)                        # (Lp, Kp)

        # Reassociated attention: never materialize h @ wk or h @ wv.
        q = jnp.dot(ds, wq_ref[...].astype(f32), preferred_element_type=f32)   # (1, Kp)
        kq = jnp.dot(q, wkt_ref[...].astype(f32), preferred_element_type=f32)  # (1, Kp) = q @ wk^T
        scores = jnp.dot(kq, h.T, preferred_element_type=f32)                  # (1, Lp)

        lane = lax.broadcasted_iota(jnp.int32, scores.shape, 1)
        scores = jnp.where(lane < l_real, scores, f32(-1e30))                  # mask padding

        m = jnp.max(scores, axis=-1, keepdims=True)
        e = jnp.exp(scores - m)
        dist = e * pl.reciprocal(jnp.sum(e, axis=-1, keepdims=True), approx=True)

        # ctx = (dist @ h) @ wv
        dh = jnp.dot(dist, h, preferred_element_type=f32)                       # (1, Kp)
        ctx = jnp.dot(dh, wv_ref[...].astype(f32), preferred_element_type=f32)  # (1, Kp)

        # intermediate_state = tanh([ds; ctx] @ W_state), split to avoid concat.
        inter = jnp.tanh(
            jnp.dot(ds, wsd_ref[...].astype(f32), preferred_element_type=f32)
            + jnp.dot(ctx, wsk_ref[...].astype(f32), preferred_element_type=f32))  # (1, Dp)
        # TODO(synk): dropout is identity at dropout_amount=0.0 (inference path).

        # Snippet scores land in the first NS lanes of the tail slab (embt is
        # zero-padded past NS columns / SS rows, so the rest is exactly 0).
        scorer = jnp.dot(inter, wsnip_ref[...].astype(f32),
                         preferred_element_type=f32)                            # (1, SSp)
        tail = jnp.dot(scorer, embt_ref[...].astype(f32),
                       preferred_element_type=f32)                              # (1, Tp)

        # Anonymization-token scores: anon_ref[0, t] holds the input index whose
        # raw attention score belongs at tail lane t (or -1).  One one-hot
        # compare + one MXU matmul replaces the 16-way unrolled gather.
        l_pad = scores.shape[1]
        t_pad = tail.shape[1]
        row_l = lax.broadcasted_iota(jnp.int32, (l_pad, t_pad), 0)
        onehot = (row_l == anon_ref[...]).astype(f32)                           # (Lp, Tp)
        tail = tail + jnp.dot(scores, onehot, preferred_element_type=f32)

        scores_ref[...] = scores
        dist_ref[...] = dist
        ctx_ref[...] = ctx
        tail_ref[...] = tail
        inter_sc[...] = inter.astype(jnp.bfloat16)        # bf16 once, reused per tile

    # Vocabulary GEMV on the current streamed wvoc tile (every grid step).
    vocab_ref[...] = (jnp.dot(inter_sc[...], wvoc_ref[...],
                              preferred_element_type=jnp.float32)
                      + bvoc_ref[...])


def _fused_call(meta, ds_p, h_p, anon_p, embt_p, params, *, l_pad, d_pad, k_pad,
                ss_pad, tail_pad, tile_v, v_grid, num_tiles):
    (wq_p, wkt_p, wv_p, wsd_p, wsk_p, wsnip_p, wvoc_p, bvoc_p) = params

    def const(j, meta_ref):          # resident (fetched once) blocks
        return (0, 0)

    def vtile(j, meta_ref):          # streamed vocab tiles
        return (0, j)

    grid_spec = pltpu.PrefetchScalarGridSpec(
        num_scalar_prefetch=1,
        grid=(num_tiles,),
        in_specs=[
            pl.BlockSpec((1, d_pad), const),           # ds
            pl.BlockSpec((l_pad, k_pad), const),       # h
            pl.BlockSpec((d_pad, k_pad), const),       # wq
            pl.BlockSpec((k_pad, k_pad), const),       # wk^T
            pl.BlockSpec((k_pad, k_pad), const),       # wv
            pl.BlockSpec((d_pad, d_pad), const),       # ws[:D]
            pl.BlockSpec((k_pad, d_pad), const),       # ws[D:]
            pl.BlockSpec((d_pad, ss_pad), const),      # wsnip
            pl.BlockSpec((ss_pad, tail_pad), const),   # snippet embeddings^T
            pl.BlockSpec((1, tail_pad), const),        # anon lane -> input index
            pl.BlockSpec((d_pad, tile_v), vtile),      # wvoc (streamed, bf16)
            pl.BlockSpec((1, tile_v), vtile),          # bvoc (streamed)
        ],
        out_specs=[
            pl.BlockSpec((1, tile_v), vtile),          # vocab scores
            pl.BlockSpec((1, l_pad), const),           # raw attention scores
            pl.BlockSpec((1, l_pad), const),           # attention distribution
            pl.BlockSpec((1, k_pad), const),           # context vector
            pl.BlockSpec((1, tail_pad), const),        # [snippets | anon | 0]
        ],
        scratch_shapes=[pltpu.VMEM((1, d_pad), jnp.bfloat16)],
    )
    out_shape = (
        jax.ShapeDtypeStruct((1, v_grid), jnp.float32),
        jax.ShapeDtypeStruct((1, l_pad), jnp.float32),
        jax.ShapeDtypeStruct((1, l_pad), jnp.float32),
        jax.ShapeDtypeStruct((1, k_pad), jnp.float32),
        jax.ShapeDtypeStruct((1, tail_pad), jnp.float32),
    )

    # VMEM footprint accounting (bytes) -> explicit, v7x-safe limit.
    resident = 2 * (d_pad + l_pad * k_pad + d_pad * k_pad + 2 * k_pad * k_pad
                    + d_pad * d_pad + k_pad * d_pad + d_pad * ss_pad
                    + ss_pad * tail_pad) + 4 * tail_pad
    streamed = 2 * (2 * d_pad * tile_v + 4 * tile_v + 4 * tile_v)   # double buffered
    outs = 4 * (2 * l_pad + k_pad + tail_pad)
    transient = 4 * (2 * l_pad * k_pad + l_pad * tail_pad
                     + 2 * max(d_pad, k_pad) * max(d_pad, k_pad))
    vmem_limit = 2 * resident + streamed + 2 * outs + transient + (2 << 20)
    vmem_limit = int(min(max(vmem_limit, 8 << 20), _VMEM_CAP_BYTES))

    flops = (2 * d_pad * v_grid
             + 2 * (d_pad * k_pad + 2 * k_pad * k_pad + 2 * l_pad * k_pad
                    + d_pad * d_pad + k_pad * d_pad + d_pad * ss_pad
                    + ss_pad * tail_pad + l_pad * tail_pad))
    bytes_accessed = (2 * d_pad * v_grid + 4 * v_grid * 2 + resident
                      + 4 * (2 * l_pad + k_pad + tail_pad))

    return pl.pallas_call(
        _fused_kernel,
        out_shape=out_shape,
        grid_spec=grid_spec,
        compiler_params=pltpu.CompilerParams(
            dimension_semantics=("arbitrary",),
            vmem_limit_bytes=vmem_limit),
        cost_estimate=pl.CostEstimate(flops=flops,
                                      transcendentals=l_pad + d_pad,
                                      bytes_accessed=bytes_accessed),
    )(meta, ds_p, h_p, wq_p, wkt_p, wv_p, wsd_p, wsk_p, wsnip_p, embt_p, anon_p,
      wvoc_p, bvoc_p)


# ----------------------------------------------------------------------------
# Jitted forward path (padding, one pallas_call, final assembly).
# ----------------------------------------------------------------------------
@functools.partial(jax.jit, static_argnames=("dims",))
def _forward_impl(params, ds, h, emb, meta, anon_lanes, *, dims):
    (L, NS, num_anon, D, K, V, SS, d_pad, k_pad, ss_pad, tail_pad,
     tile_v, v_grid, num_tiles) = dims
    bf16 = jnp.bfloat16

    l_pad = _round_up(max(L, 1), _LANE)

    ds_p = jnp.zeros((1, d_pad), bf16).at[0, :D].set(ds.astype(bf16))
    h_p = jnp.zeros((l_pad, k_pad), bf16).at[:L, :K].set(h.astype(bf16))
    embt_p = jnp.zeros((ss_pad, tail_pad), bf16)
    if NS > 0:
        embt_p = embt_p.at[:SS, :NS].set(emb.T.astype(bf16))

    vocab_p, scores_p, dist_p, ctx_p, tail_p = _fused_call(
        meta, ds_p, h_p, anon_lanes, embt_p, params,
        l_pad=l_pad, d_pad=d_pad, k_pad=k_pad, ss_pad=ss_pad,
        tail_pad=tail_pad, tile_v=tile_v, v_grid=v_grid, num_tiles=num_tiles)

    final = jnp.concatenate([vocab_p[0, :V], tail_p[0, :NS + num_anon]], axis=0)
    return (jnp.squeeze(final), scores_p[0, :L], dist_p[0, :L], ctx_p[0, :K])


# ----------------------------------------------------------------------------
# Module
# ----------------------------------------------------------------------------
class SnippetAnonymizationTokenPredictorPallas:
    """JAX/Pallas re-implementation of the forward pass."""

    def __init__(self, decoder_state_size, attention_key_size, vocab_size,
                 snippet_size, key=None):
        if key is None:
            key = jax.random.PRNGKey(0)
        D, K, V, SS = decoder_state_size, attention_key_size, vocab_size, snippet_size
        self.D, self.K, self.V, self.SS = D, K, V, SS
        self.D_pad = _round_up(D, _LANE)
        self.K_pad = _round_up(K, _LANE)
        self.SS_pad = _round_up(SS, _LANE)

        # Vocab tile selection: ~4 MiB of bf16 per tile, multiple of 128,
        # rebalanced so streamed padding waste stays at most ~128*num_tiles cols.
        v_pad = _round_up(V, _LANE)
        tile_from_target = max(
            _LANE, ((_TARGET_TILE_BYTES // (2 * self.D_pad)) // _LANE) * _LANE)
        tile_v = min(v_pad, tile_from_target)
        num_tiles = _cdiv(v_pad, tile_v)
        tile_v = _round_up(_cdiv(v_pad, num_tiles), _LANE)
        self.tile_v = tile_v
        self.num_tiles = num_tiles
        self.v_grid = num_tiles * tile_v

        ks = jax.random.split(key, 8)
        scale = 0.1
        f32, bf16 = jnp.float32, jnp.bfloat16

        def pad2(a, rows, cols, dtype):
            out = jnp.zeros((rows, cols), dtype)
            return out.at[:a.shape[0], :a.shape[1]].set(a.astype(dtype))

        wq = scale * jax.random.normal(ks[0], (D, K), f32)
        wk = scale * jax.random.normal(ks[1], (K, K), f32)
        wv = scale * jax.random.normal(ks[2], (K, K), f32)
        ws = scale * jax.random.normal(ks[3], (D + K, D), f32)
        wvoc = scale * jax.random.normal(ks[4], (D, V), f32)
        bvoc = scale * jax.random.normal(ks[5], (1, V), f32)
        wsnip = scale * jax.random.normal(ks[6], (D, SS), f32)

        # bf16 streamed weights, padded to lane multiples; wk stored transposed.
        self.wq_p = pad2(wq, self.D_pad, self.K_pad, bf16)
        self.wkt_p = pad2(wk.T, self.K_pad, self.K_pad, bf16)
        self.wv_p = pad2(wv, self.K_pad, self.K_pad, bf16)
        self.wsd_p = pad2(ws[:D], self.D_pad, self.D_pad, bf16)
        self.wsk_p = pad2(ws[D:], self.K_pad, self.D_pad, bf16)
        self.wvoc_p = pad2(wvoc, self.D_pad, self.v_grid, bf16)
        self.bvoc_p = pad2(bvoc, 1, self.v_grid, jnp.float32)
        self.wsnip_p = pad2(wsnip, self.D_pad, self.SS_pad, bf16)

    def forward(self, decoder_state, input_hidden_states, input_sequence,
                snippet_embeddings, snippet_names, is_anon_tok,
                dropout_amount=0.0):
        assert len(input_sequence) > 0
        L = len(input_sequence)
        assert input_hidden_states.shape[0] == L
        NS = len(snippet_names) if snippet_names else 0
        anon_idx = [i for i, tok in enumerate(input_sequence) if is_anon_tok(tok)]
        assert len(anon_idx) <= MAX_ANON
        num_anon = len(anon_idx)

        tail_pad = _round_up(max(NS + MAX_ANON, 1), _LANE)
        meta = jnp.asarray(np.array([L], np.int32))
        anon_np = np.full((1, tail_pad), -1, np.int32)   # -1 = "no anon token here"
        for i, idx in enumerate(anon_idx):
            anon_np[0, NS + i] = idx
        anon_lanes = jnp.asarray(anon_np)

        if NS > 0:
            emb = snippet_embeddings.astype(jnp.float32)          # (NS, SS)
        else:
            emb = jnp.zeros((1, self.SS), jnp.float32)

        dims = (L, NS, num_anon, self.D, self.K, self.V, self.SS,
                self.D_pad, self.K_pad, self.SS_pad, tail_pad,
                self.tile_v, self.v_grid, self.num_tiles)
        params = (self.wq_p, self.wkt_p, self.wv_p, self.wsd_p, self.wsk_p,
                  self.wsnip_p, self.wvoc_p, self.bvoc_p)

        final, scores, dist, ctx = _forward_impl(
            params, decoder_state.reshape(-1), input_hidden_states, emb, meta,
            anon_lanes, dims=dims)

        attention_results = AttentionResult(scores=scores, distribution=dist,
                                            vector=ctx)
        aligned_tokens = ["vocab_%d" % i for i in range(self.V)]
        if snippet_names:
            aligned_tokens.extend(snippet_names)
        aligned_tokens.extend([input_sequence[i] for i in anon_idx])

        return TokenPrediction(final, aligned_tokens, attention_results,
                               decoder_state)


# ----------------------------------------------------------------------------
# Pure-jnp reference mirroring the original (un-reassociated) PyTorch math,
# using the same bf16-rounded weights the kernel sees.
# ----------------------------------------------------------------------------
def _reference_forward(module, ds, h, input_sequence, emb, snippet_names,
                       is_anon_tok):
    f32 = jnp.float32
    D, K, V, SS = module.D, module.K, module.V, module.SS
    wq = module.wq_p[:D, :K].astype(f32)
    wk = module.wkt_p[:K, :K].astype(f32).T
    wv = module.wv_p[:K, :K].astype(f32)
    ws_d = module.wsd_p[:D, :D].astype(f32)
    ws_k = module.wsk_p[:K, :D].astype(f32)
    wvoc = module.wvoc_p[:D, :V].astype(f32)
    bvoc = module.bvoc_p[:1, :V].astype(f32)
    wsnip = module.wsnip_p[:D, :SS].astype(f32)

    ds = ds.astype(f32).reshape(1, -1)
    h = h.astype(f32)
    emb = emb.astype(f32)

    q = ds @ wq                                        # (1, K)
    keys_t = h @ wk                                    # (L, K)
    scores = (keys_t @ q.reshape(-1, 1)).reshape(-1)   # (L,)
    dist = jax.nn.softmax(scores)                      # (L,)
    ctx = (dist.reshape(1, -1) @ (h @ wv)).reshape(-1) # (K,)
    inter = jnp.tanh(ds @ ws_d + ctx.reshape(1, -1) @ ws_k)   # (1, D)
    vocab = (inter @ wvoc + bvoc).reshape(-1)          # (V,)
    scorer = (inter @ wsnip).reshape(-1)               # (SS,)
    snip = emb @ scorer                                # (NS,)

    final = vocab
    if snippet_names:
        final = jnp.concatenate([final, snip])
    anon_idx = [i for i, t in enumerate(input_sequence) if is_anon_tok(t)]
    if anon_idx:
        final = jnp.concatenate([final, scores[jnp.array(anon_idx)]])
    return jnp.squeeze(final), scores, dist, ctx


if __name__ == "__main__":
    D, K, L, V, SS, NS = 32, 16, 8, 24, 16, 4   # small, forward-consistent sizes

    key = jax.random.PRNGKey(0)
    k_ds, k_h, k_emb, k_params = jax.random.split(key, 4)

    decoder_state = jax.random.normal(k_ds, (D,), jnp.float32)
    input_hidden_states = jax.random.normal(k_h, (L, K), jnp.float32)
    snippet_embeddings = jax.random.normal(k_emb, (NS, SS), jnp.float32)
    snippet_names = ["snippet_%d" % i for i in range(NS)]
    input_sequence = ["show", "ANON_CITY_0", "flights", "to", "ANON_CITY_1",
                      "on", "ANON_DATE_0", "please"]
    is_anon_tok = lambda t: t.startswith("ANON_")

    module = SnippetAnonymizationTokenPredictorPallas(D, K, V, SS, key=k_params)

    pred = module.forward(decoder_state, input_hidden_states, input_sequence,
                          snippet_embeddings, snippet_names, is_anon_tok)
    jax.block_until_ready(pred.scores)

    ref_final, ref_scores, ref_dist, ref_ctx = _reference_forward(
        module, decoder_state, input_hidden_states, input_sequence,
        snippet_embeddings, snippet_names, is_anon_tok)

    assert pred.scores.shape == (V + NS + 3,)
    assert len(pred.aligned_tokens) == V + NS + 3
    tol = dict(atol=3e-2, rtol=3e-2)   # bf16 weights, f32 activations/accumulate
    assert jnp.allclose(pred.scores, ref_final, **tol)
    assert jnp.allclose(pred.utterance_attention_results.scores, ref_scores, **tol)
    assert jnp.allclose(pred.utterance_attention_results.distribution, ref_dist, **tol)
    assert jnp.allclose(pred.utterance_attention_results.vector, ref_ctx, **tol)

    print("KERNEL_OK")
</pallas_src>

<mosaic_0001>
module attributes {stable_mosaic.version = 11 : i64} {
  func.func @_fused_kernel(%arg0: i32, %arg1: memref<1xi32, #tpu.memory_space<smem>>, %arg2: memref<1x128xbf16, #tpu.memory_space<vmem>>, %arg3: memref<128x128xbf16, #tpu.memory_space<vmem>>, %arg4: memref<128x128xbf16, #tpu.memory_space<vmem>>, %arg5: memref<128x128xbf16, #tpu.memory_space<vmem>>, %arg6: memref<128x128xbf16, #tpu.memory_space<vmem>>, %arg7: memref<128x128xbf16, #tpu.memory_space<vmem>>, %arg8: memref<128x128xbf16, #tpu.memory_space<vmem>>, %arg9: memref<128x128xbf16, #tpu.memory_space<vmem>>, %arg10: memref<128x128xbf16, #tpu.memory_space<vmem>>, %arg11: memref<1x128xi32, #tpu.memory_space<vmem>>, %arg12: memref<128x128xbf16, #tpu.memory_space<vmem>>, %arg13: memref<1x128xf32, #tpu.memory_space<vmem>>, %arg14: memref<1x128xf32, #tpu.memory_space<vmem>>, %arg15: memref<1x128xf32, #tpu.memory_space<vmem>>, %arg16: memref<1x128xf32, #tpu.memory_space<vmem>>, %arg17: memref<1x128xf32, #tpu.memory_space<vmem>>, %arg18: memref<1x128xf32, #tpu.memory_space<vmem>>, %arg19: memref<1x128xbf16, #tpu.memory_space<vmem>>) attributes {dimension_semantics = [#tpu.dimension_semantics<arbitrary>], iteration_bounds = array<i64: 1>, scalar_prefetch = 1 : i64, scratch_operands = 1 : i64, tpu.core_type = #tpu.core_type<tc>, window_params = [{pipeline_mode = #tpu.pipeline_mode<synchronous>, transform_indices = @transform_0, window_bounds = array<i64: 1, 128>}, {pipeline_mode = #tpu.pipeline_mode<synchronous>, transform_indices = @transform_1, window_bounds = array<i64: 128, 128>}, {pipeline_mode = #tpu.pipeline_mode<synchronous>, transform_indices = @transform_2, window_bounds = array<i64: 128, 128>}, {pipeline_mode = #tpu.pipeline_mode<synchronous>, transform_indices = @transform_3, window_bounds = array<i64: 128, 128>}, {pipeline_mode = #tpu.pipeline_mode<synchronous>, transform_indices = @transform_4, window_bounds = array<i64: 128, 128>}, {pipeline_mode = #tpu.pipeline_mode<synchronous>, transform_indices = @transform_5, window_bounds = array<i64: 128, 128>}, {pipeline_mode = #tpu.pipeline_mode<synchronous>, transform_indices = @transform_6, window_bounds = array<i64: 128, 128>}, {pipeline_mode = #tpu.pipeline_mode<synchronous>, transform_indices = @transform_7, window_bounds = array<i64: 128, 128>}, {pipeline_mode = #tpu.pipeline_mode<synchronous>, transform_indices = @transform_8, window_bounds = array<i64: 128, 128>}, {pipeline_mode = #tpu.pipeline_mode<synchronous>, transform_indices = @transform_9, window_bounds = array<i64: 1, 128>}, {transform_indices = @transform_10, window_bounds = array<i64: 128, 128>}, {transform_indices = @transform_11, window_bounds = array<i64: 1, 128>}, {transform_indices = @transform_12, window_bounds = array<i64: 1, 128>}, {pipeline_mode = #tpu.pipeline_mode<synchronous>, transform_indices = @transform_13, window_bounds = array<i64: 1, 128>}, {pipeline_mode = #tpu.pipeline_mode<synchronous>, transform_indices = @transform_14, window_bounds = array<i64: 1, 128>}, {pipeline_mode = #tpu.pipeline_mode<synchronous>, transform_indices = @transform_15, window_bounds = array<i64: 1, 128>}, {pipeline_mode = #tpu.pipeline_mode<synchronous>, transform_indices = @transform_16, window_bounds = array<i64: 1, 128>}]} {
    %c0_i32 = arith.constant 0 : i32
    %0 = arith.cmpi eq, %arg0, %c0_i32 : i32
    %1 = arith.extui %0 : i1 to i32
    %c0_i32_0 = arith.constant 0 : i32
    %2 = arith.cmpi ne, %1, %c0_i32_0 : i32
    scf.if %2 {
      %c0_8 = arith.constant 0 : index
      %9 = memref.load %arg1[%c0_8] : memref<1xi32, #tpu.memory_space<smem>>
      %c0_9 = arith.constant 0 : index
      %c0_10 = arith.constant 0 : index
      %10 = vector.load %arg2[%c0_9, %c0_10] : memref<1x128xbf16, #tpu.memory_space<vmem>>, vector<1x128xbf16>
      %11 = arith.extf %10 : vector<1x128xbf16> to vector<1x128xf32>
      %c0_11 = arith.constant 0 : index
      %c0_12 = arith.constant 0 : index
      %12 = vector.load %arg3[%c0_11, %c0_12] : memref<128x128xbf16, #tpu.memory_space<vmem>>, vector<128x128xbf16>
      %13 = arith.extf %12 : vector<128x128xbf16> to vector<128x128xf32>
      %c0_13 = arith.constant 0 : index
      %c0_14 = arith.constant 0 : index
      %14 = vector.load %arg4[%c0_13, %c0_14] : memref<128x128xbf16, #tpu.memory_space<vmem>>, vector<128x128xbf16>
      %15 = arith.extf %14 : vector<128x128xbf16> to vector<128x128xf32>
      %cst_15 = arith.constant dense<0.000000e+00> : vector<1x128xf32>
      %16 = tpu.matmul %11, %15, %cst_15 {dimension_numbers = #tpu.dot_dimension_numbers<[1], [0], [0], [1], [0, 0, 1, 1], [], []>} : vector<1x128xf32>, vector<128x128xf32>, vector<1x128xf32> -> vector<1x128xf32>
      %c0_16 = arith.constant 0 : index
      %c0_17 = arith.constant 0 : index
      %17 = vector.load %arg5[%c0_16, %c0_17] : memref<128x128xbf16, #tpu.memory_space<vmem>>, vector<128x128xbf16>
      %18 = arith.extf %17 : vector<128x128xbf16> to vector<128x128xf32>
      %cst_18 = arith.constant dense<0.000000e+00> : vector<1x128xf32>
      %19 = tpu.matmul %16, %18, %cst_18 {dimension_numbers = #tpu.dot_dimension_numbers<[1], [0], [0], [1], [0, 0, 1, 1], [], []>} : vector<1x128xf32>, vector<128x128xf32>, vector<1x128xf32> -> vector<1x128xf32>
      %20 = tpu.transpose %13, [1, 0] : vector<128x128xf32> -> vector<128x128xf32>
      %cst_19 = arith.constant dense<0.000000e+00> : vector<1x128xf32>
      %21 = tpu.matmul %19, %20, %cst_19 {dimension_numbers = #tpu.dot_dimension_numbers<[1], [0], [0], [1], [0, 0, 1, 1], [], []>} : vector<1x128xf32>, vector<128x128xf32>, vector<1x128xf32> -> vector<1x128xf32>
      %22 = tpu.iota {dimensions = array<i32: 1>} : vector<1x128xi32>
      %23 = vector.broadcast %9 : i32 to vector<1x128xi32>
      %24 = arith.cmpi slt, %22, %23 : vector<1x128xi32>
      %cst_20 = arith.constant -1.000000e+30 : f32
      %25 = vector.broadcast %cst_20 : f32 to vector<1x128xf32>
      %26 = arith.select %24, %21, %25 : vector<1x128xi1>, vector<1x128xf32>
      %cst_21 = arith.constant dense<0xFF800000> : vector<1xf32>
      %27 = vector.multi_reduction <maximumf>, %26, %cst_21 [1] : vector<1x128xf32> to vector<1xf32>
      %28 = vector.shape_cast %27 : vector<1xf32> to vector<1x1xf32>
      %29 = vector.broadcast %28 : vector<1x1xf32> to vector<1x128xf32>
      %30 = arith.subf %26, %29 : vector<1x128xf32>
      %31 = math.exp %30 : vector<1x128xf32>
      %cst_22 = arith.constant dense<0.000000e+00> : vector<1xf32>
      %32 = vector.multi_reduction <add>, %31, %cst_22 [1] : vector<1x128xf32> to vector<1xf32>
      %33 = vector.shape_cast %32 : vector<1xf32> to vector<1x1xf32>
      %34 = tpu.reciprocal %33 {approx = true} : vector<1x1xf32> -> vector<1x1xf32>
      %35 = vector.broadcast %34 : vector<1x1xf32> to vector<1x128xf32>
      %36 = arith.mulf %31, %35 : vector<1x128xf32>
      %cst_23 = arith.constant dense<0.000000e+00> : vector<1x128xf32>
      %37 = tpu.matmul %36, %13, %cst_23 {dimension_numbers = #tpu.dot_dimension_numbers<[1], [0], [0], [1], [0, 0, 1, 1], [], []>} : vector<1x128xf32>, vector<128x128xf32>, vector<1x128xf32> -> vector<1x128xf32>
      %c0_24 = arith.constant 0 : index
      %c0_25 = arith.constant 0 : index
      %38 = vector.load %arg6[%c0_24, %c0_25] : memref<128x128xbf16, #tpu.memory_space<vmem>>, vector<128x128xbf16>
      %39 = arith.extf %38 : vector<128x128xbf16> to vector<128x128xf32>
      %cst_26 = arith.constant dense<0.000000e+00> : vector<1x128xf32>
      %40 = tpu.matmul %37, %39, %cst_26 {dimension_numbers = #tpu.dot_dimension_numbers<[1], [0], [0], [1], [0, 0, 1, 1], [], []>} : vector<1x128xf32>, vector<128x128xf32>, vector<1x128xf32> -> vector<1x128xf32>
      %c0_27 = arith.constant 0 : index
      %c0_28 = arith.constant 0 : index
      %41 = vector.load %arg7[%c0_27, %c0_28] : memref<128x128xbf16, #tpu.memory_space<vmem>>, vector<128x128xbf16>
      %42 = arith.extf %41 : vector<128x128xbf16> to vector<128x128xf32>
      %cst_29 = arith.constant dense<0.000000e+00> : vector<1x128xf32>
      %43 = tpu.matmul %11, %42, %cst_29 {dimension_numbers = #tpu.dot_dimension_numbers<[1], [0], [0], [1], [0, 0, 1, 1], [], []>} : vector<1x128xf32>, vector<128x128xf32>, vector<1x128xf32> -> vector<1x128xf32>
      %c0_30 = arith.constant 0 : index
      %c0_31 = arith.constant 0 : index
      %44 = vector.load %arg8[%c0_30, %c0_31] : memref<128x128xbf16, #tpu.memory_space<vmem>>, vector<128x128xbf16>
      %45 = arith.extf %44 : vector<128x128xbf16> to vector<128x128xf32>
      %cst_32 = arith.constant dense<0.000000e+00> : vector<1x128xf32>
      %46 = tpu.matmul %40, %45, %cst_32 {dimension_numbers = #tpu.dot_dimension_numbers<[1], [0], [0], [1], [0, 0, 1, 1], [], []>} : vector<1x128xf32>, vector<128x128xf32>, vector<1x128xf32> -> vector<1x128xf32>
      %47 = arith.addf %43, %46 : vector<1x128xf32>
      %48 = math.tanh %47 : vector<1x128xf32>
      %c0_33 = arith.constant 0 : index
      %c0_34 = arith.constant 0 : index
      %49 = vector.load %arg9[%c0_33, %c0_34] : memref<128x128xbf16, #tpu.memory_space<vmem>>, vector<128x128xbf16>
      %50 = arith.extf %49 : vector<128x128xbf16> to vector<128x128xf32>
      %cst_35 = arith.constant dense<0.000000e+00> : vector<1x128xf32>
      %51 = tpu.matmul %48, %50, %cst_35 {dimension_numbers = #tpu.dot_dimension_numbers<[1], [0], [0], [1], [0, 0, 1, 1], [], []>} : vector<1x128xf32>, vector<128x128xf32>, vector<1x128xf32> -> vector<1x128xf32>
      %c0_36 = arith.constant 0 : index
      %c0_37 = arith.constant 0 : index
      %52 = vector.load %arg10[%c0_36, %c0_37] : memref<128x128xbf16, #tpu.memory_space<vmem>>, vector<128x128xbf16>
      %53 = arith.extf %52 : vector<128x128xbf16> to vector<128x128xf32>
      %cst_38 = arith.constant dense<0.000000e+00> : vector<1x128xf32>
      %54 = tpu.matmul %51, %53, %cst_38 {dimension_numbers = #tpu.dot_dimension_numbers<[1], [0], [0], [1], [0, 0, 1, 1], [], []>} : vector<1x128xf32>, vector<128x128xf32>, vector<1x128xf32> -> vector<1x128xf32>
      %55 = tpu.iota {dimensions = array<i32: 0>} : vector<128x128xi32>
      %c0_39 = arith.constant 0 : index
      %c0_40 = arith.constant 0 : index
      %56 = vector.load %arg11[%c0_39, %c0_40] : memref<1x128xi32, #tpu.memory_space<vmem>>, vector<1x128xi32>
      %57 = vector.broadcast %56 : vector<1x128xi32> to vector<128x128xi32>
      %58 = arith.cmpi eq, %55, %57 : vector<128x128xi32>
      %59 = arith.extui %58 : vector<128x128xi1> to vector<128x128xi32>
      %60 = arith.sitofp %59 : vector<128x128xi32> to vector<128x128xf32>
      %cst_41 = arith.constant dense<0.000000e+00> : vector<1x128xf32>
      %61 = tpu.matmul %26, %60, %cst_41 {dimension_numbers = #tpu.dot_dimension_numbers<[1], [0], [0], [1], [0, 0, 1, 1], [], []>} : vector<1x128xf32>, vector<128x128xf32>, vector<1x128xf32> -> vector<1x128xf32>
      %62 = arith.addf %54, %61 : vector<1x128xf32>
      %c0_42 = arith.constant 0 : index
      %c0_43 = arith.constant 0 : index
      %63 = vector.load %arg15[%c0_42, %c0_43] : memref<1x128xf32, #tpu.memory_space<vmem>>, vector<1x128xf32>
      tpu.vector_store %arg15[%c0_42, %c0_43], %26 {strides = array<i32>} : memref<1x128xf32, #tpu.memory_space<vmem>>, vector<1x128xf32>,
      %c0_44 = arith.constant 0 : index
      %c0_45 = arith.constant 0 : index
      %64 = vector.load %arg16[%c0_44, %c0_45] : memref<1x128xf32, #tpu.memory_space<vmem>>, vector<1x128xf32>
      tpu.vector_store %arg16[%c0_44, %c0_45], %36 {strides = array<i32>} : memref<1x128xf32, #tpu.memory_space<vmem>>, vector<1x128xf32>,
      %c0_46 = arith.constant 0 : index
      %c0_47 = arith.constant 0 : index
      %65 = vector.load %arg17[%c0_46, %c0_47] : memref<1x128xf32, #tpu.memory_space<vmem>>, vector<1x128xf32>
      tpu.vector_store %arg17[%c0_46, %c0_47], %40 {strides = array<i32>} : memref<1x128xf32, #tpu.memory_space<vmem>>, vector<1x128xf32>,
      %c0_48 = arith.constant 0 : index
      %c0_49 = arith.constant 0 : index
      %66 = vector.load %arg18[%c0_48, %c0_49] : memref<1x128xf32, #tpu.memory_space<vmem>>, vector<1x128xf32>
      tpu.vector_store %arg18[%c0_48, %c0_49], %62 {strides = array<i32>} : memref<1x128xf32, #tpu.memory_space<vmem>>, vector<1x128xf32>,
      %67 = arith.truncf %48 : vector<1x128xf32> to vector<1x128xbf16>
      %c0_50 = arith.constant 0 : index
      %c0_51 = arith.constant 0 : index
      %68 = vector.load %arg19[%c0_50, %c0_51] : memref<1x128xbf16, #tpu.memory_space<vmem>>, vector<1x128xbf16>
      tpu.vector_store %arg19[%c0_50, %c0_51], %67 {strides = array<i32>} : memref<1x128xbf16, #tpu.memory_space<vmem>>, vector<1x128xbf16>,
    } else {
    }
    %c0 = arith.constant 0 : index
    %c0_1 = arith.constant 0 : index
    %3 = vector.load %arg19[%c0, %c0_1] : memref<1x128xbf16, #tpu.memory_space<vmem>>, vector<1x128xbf16>
    %c0_2 = arith.constant 0 : index
    %c0_3 = arith.constant 0 : index
    %4 = vector.load %arg12[%c0_2, %c0_3] : memref<128x128xbf16, #tpu.memory_space<vmem>>, vector<128x128xbf16>
    %cst = arith.constant dense<0.000000e+00> : vector<1x128xf32>
    %5 = tpu.matmul %3, %4, %cst {dimension_numbers = #tpu.dot_dimension_numbers<[1], [0], [0], [1], [0, 0, 1, 1], [], []>} : vector<1x128xbf16>, vector<128x128xbf16>, vector<1x128xf32> -> vector<1x128xf32>
    %c0_4 = arith.constant 0 : index
    %c0_5 = arith.constant 0 : index
    %6 = vector.load %arg13[%c0_4, %c0_5] : memref<1x128xf32, #tpu.memory_space<vmem>>, vector<1x128xf32>
    %7 = arith.addf %5, %6 : vector<1x128xf32>
    %c0_6 = arith.constant 0 : index
    %c0_7 = arith.constant 0 : index
    %8 = vector.load %arg14[%c0_6, %c0_7] : memref<1x128xf32, #tpu.memory_space<vmem>>, vector<1x128xf32>
    tpu.vector_store %arg14[%c0_6, %c0_7], %7 {strides = array<i32>} : memref<1x128xf32, #tpu.memory_space<vmem>>, vector<1x128xf32>,
    return
  }
  func.func @transform_0(%arg0: i32, %arg1: memref<1xi32, #tpu.memory_space<smem>>) -> (i32, i32) {
    %c0_i32 = arith.constant 0 : i32
    %c0_i32_0 = arith.constant 0 : i32
    %c0_i32_1 = arith.constant 0 : i32
    return %c0_i32, %c0_i32_0 : i32, i32
  }
  func.func @transform_1(%arg0: i32, %arg1: memref<1xi32, #tpu.memory_space<smem>>) -> (i32, i32) {
    %c0_i32 = arith.constant 0 : i32
    %c0_i32_0 = arith.constant 0 : i32
    %c0_i32_1 = arith.constant 0 : i32
    return %c0_i32, %c0_i32_0 : i32, i32
  }
  func.func @transform_2(%arg0: i32, %arg1: memref<1xi32, #tpu.memory_space<smem>>) -> (i32, i32) {
    %c0_i32 = arith.constant 0 : i32
    %c0_i32_0 = arith.constant 0 : i32
    %c0_i32_1 = arith.constant 0 : i32
    return %c0_i32, %c0_i32_0 : i32, i32
  }
  func.func @transform_3(%arg0: i32, %arg1: memref<1xi32, #tpu.memory_space<smem>>) -> (i32, i32) {
    %c0_i32 = arith.constant 0 : i32
    %c0_i32_0 = arith.constant 0 : i32
    %c0_i32_1 = arith.constant 0 : i32
    return %c0_i32, %c0_i32_0 : i32, i32
  }
  func.func @transform_4(%arg0: i32, %arg1: memref<1xi32, #tpu.memory_space<smem>>) -> (i32, i32) {
    %c0_i32 = arith.constant 0 : i32
    %c0_i32_0 = arith.constant 0 : i32
    %c0_i32_1 = arith.constant 0 : i32
    return %c0_i32, %c0_i32_0 : i32, i32
  }
  func.func @transform_5(%arg0: i32, %arg1: memref<1xi32, #tpu.memory_space<smem>>) -> (i32, i32) {
    %c0_i32 = arith.constant 0 : i32
    %c0_i32_0 = arith.constant 0 : i32
    %c0_i32_1 = arith.constant 0 : i32
    return %c0_i32, %c0_i32_0 : i32, i32
  }
  func.func @transform_6(%arg0: i32, %arg1: memref<1xi32, #tpu.memory_space<smem>>) -> (i32, i32) {
    %c0_i32 = arith.constant 0 : i32
    %c0_i32_0 = arith.constant 0 : i32
    %c0_i32_1 = arith.constant 0 : i32
    return %c0_i32, %c0_i32_0 : i32, i32
  }
  func.func @transform_7(%arg0: i32, %arg1: memref<1xi32, #tpu.memory_space<smem>>) -> (i32, i32) {
    %c0_i32 = arith.constant 0 : i32
    %c0_i32_0 = arith.constant 0 : i32
    %c0_i32_1 = arith.constant 0 : i32
    return %c0_i32, %c0_i32_0 : i32, i32
  }
  func.func @transform_8(%arg0: i32, %arg1: memref<1xi32, #tpu.memory_space<smem>>) -> (i32, i32) {
    %c0_i32 = arith.constant 0 : i32
    %c0_i32_0 = arith.constant 0 : i32
    %c0_i32_1 = arith.constant 0 : i32
    return %c0_i32, %c0_i32_0 : i32, i32
  }
  func.func @transform_9(%arg0: i32, %arg1: memref<1xi32, #tpu.memory_space<smem>>) -> (i32, i32) {
    %c0_i32 = arith.constant 0 : i32
    %c0_i32_0 = arith.constant 0 : i32
    %c0_i32_1 = arith.constant 0 : i32
    return %c0_i32, %c0_i32_0 : i32, i32
  }
  func.func @transform_10(%arg0: i32, %arg1: memref<1xi32, #tpu.memory_space<smem>>) -> (i32, i32) {
    %c0_i32 = arith.constant 0 : i32
    %c0_i32_0 = arith.constant 0 : i32
    return %c0_i32, %arg0 : i32, i32
  }
  func.func @transform_11(%arg0: i32, %arg1: memref<1xi32, #tpu.memory_space<smem>>) -> (i32, i32) {
    %c0_i32 = arith.constant 0 : i32
    %c0_i32_0 = arith.constant 0 : i32
    return %c0_i32, %arg0 : i32, i32
  }
  func.func @transform_12(%arg0: i32, %arg1: memref<1xi32, #tpu.memory_space<smem>>) -> (i32, i32) {
    %c0_i32 = arith.constant 0 : i32
    %c0_i32_0 = arith.constant 0 : i32
    return %c0_i32, %arg0 : i32, i32
  }
  func.func @transform_13(%arg0: i32, %arg1: memref<1xi32, #tpu.memory_space<smem>>) -> (i32, i32) {
    %c0_i32 = arith.constant 0 : i32
    %c0_i32_0 = arith.constant 0 : i32
    %c0_i32_1 = arith.constant 0 : i32
    return %c0_i32, %c0_i32_0 : i32, i32
  }
  func.func @transform_14(%arg0: i32, %arg1: memref<1xi32, #tpu.memory_space<smem>>) -> (i32, i32) {
    %c0_i32 = arith.constant 0 : i32
    %c0_i32_0 = arith.constant 0 : i32
    %c0_i32_1 = arith.constant 0 : i32
    return %c0_i32, %c0_i32_0 : i32, i32
  }
  func.func @transform_15(%arg0: i32, %arg1: memref<1xi32, #tpu.memory_space<smem>>) -> (i32, i32) {
    %c0_i32 = arith.constant 0 : i32
    %c0_i32_0 = arith.constant 0 : i32
    %c0_i32_1 = arith.constant 0 : i32
    return %c0_i32, %c0_i32_0 : i32, i32
  }
  func.func @transform_16(%arg0: i32, %arg1: memref<1xi32, #tpu.memory_space<smem>>) -> (i32, i32) {
    %c0_i32 = arith.constant 0 : i32
    %c0_i32_0 = arith.constant 0 : i32
    %c0_i32_1 = arith.constant 0 : i32
    return %c0_i32, %c0_i32_0 : i32, i32
  }
}

</mosaic_0001>

<llo_original>
// kernel: _forward_impl.1
$region0: #{_forward_impl.1}
  #allocation0 [shape = 'u32[]', space=smem, size = 0x4, offset = 0x4, fixed_abs, tag = 'smem constant byte address 0x4 - core index']
  #allocation1 [shape = 'u32[144,128]{1,0:T(1,128)}', space=vmem, size = 0x12000, scoped, tag = 'internal scratch']
  #allocation2 [shape = 'bf16[1,128]{1,0:T(2,128)(2,1)}', space=vmem, size = 0x200, scoped, tag = 'scratch operand']
  #allocation3 [shape = 's32[1]{0}', space=sflag, size = 0x4, scoped, tag = 'scoped memory for _forward_impl.1']
  #allocation4 [shape = 's32[1]{0:T(128)S(6)}', space=smem, size = 0x200, scoped, tag = 'prefetched SMEM operand 0']
  %s0 = inlined_call_operand.<no memory space> [shape: s32[1], index: 0, kind: input, shape index: {}]
  %s1 = inlined_call_operand.vmem [shape: bf16[1,128], index: 1, kind: input, shape index: {}]
  %s2 = inlined_call_operand.vmem [shape: bf16[128,128], index: 2, kind: input, shape index: {}]
  %s3 = inlined_call_operand.vmem [shape: bf16[128,128], index: 3, kind: input, shape index: {}]
  %s4 = inlined_call_operand.vmem [shape: bf16[128,128], index: 4, kind: input, shape index: {}]
  %s5 = inlined_call_operand.hbm [shape: bf16[128,128], index: 5, kind: input, shape index: {}]
  %s6 = inlined_call_operand.hbm [shape: bf16[128,128], index: 6, kind: input, shape index: {}]
  %s7 = inlined_call_operand.hbm [shape: bf16[128,128], index: 7, kind: input, shape index: {}]
  %s8 = inlined_call_operand.hbm [shape: bf16[128,128], index: 8, kind: input, shape index: {}]
  %s9 = inlined_call_operand.vmem [shape: bf16[128,128], index: 9, kind: input, shape index: {}]
  %s10 = inlined_call_operand.vmem [shape: s32[1,128], index: 10, kind: input, shape index: {}]
  %s11 = inlined_call_operand.hbm [shape: bf16[128,128], index: 11, kind: input, shape index: {}]
  %s12 = inlined_call_operand.vmem [shape: f32[1,128], index: 12, kind: input, shape index: {}]
  %s13 = inlined_call_operand.vmem [shape: f32[1,128], index: 13, kind: output, shape index: {0}]
  %s14 = inlined_call_operand.vmem [shape: f32[1,128], index: 14, kind: output, shape index: {1}]
  %s15 = inlined_call_operand.vmem [shape: f32[1,128], index: 15, kind: output, shape index: {2}]
  %s16 = inlined_call_operand.vmem [shape: f32[1,128], index: 16, kind: output, shape index: {3}]
  %s17 = inlined_call_operand.vmem [shape: f32[1,128], index: 17, kind: output, shape index: {4}]
  %18 = xla_tuple %s13, %s14, %s15, %s16, %s17
  %s19 = sld [smem:[#allocation0]]
  $region114: #{_forward_impl.1} parent=0
    _
  %s21 = ssub.s32 1, %s19
  %s22 = scalar_select 0, %s21, %s19
  %23 = sst [smem:[#allocation4]] %s0
  $region1: #{_forward_impl.1} parent=0
    #allocation5 [shape = 'u8[32768]{0}', space=vmem, size = 0x8000, scoped, tag = 'input window, operand 5, single buffered']
    #allocation6 [shape = 's32[1]{0}', space=sflag, size = 0x4, scoped, tag = 'scoped memory for _forward_impl.1']
    #allocation7 [shape = 'u8[32768]{0}', space=vmem, size = 0x8000, scoped, tag = 'input window, operand 6, single buffered']
    #allocation8 [shape = 's32[1]{0}', space=sflag, size = 0x4, scoped, tag = 'scoped memory for _forward_impl.1']
    #allocation9 [shape = 'u8[32768]{0}', space=vmem, size = 0x8000, scoped, tag = 'input window, operand 7, single buffered']
    #allocation10 [shape = 'u8[32768]{0}', space=vmem, size = 0x8000, scoped, tag = 'input window, operand 8, single buffered']
    #allocation11 [shape = 's32[1]{0}', space=sflag, size = 0x4, scoped, tag = 'scoped memory for _forward_impl.1']
    #allocation12 [shape = 'u8[32768]{0}', space=vmem, size = 0x8000, scoped, tag = 'input window, operand 11, single buffered']
    %24 = vsyncpa [#allocation6], 0
    %25 = vsyncpa [#allocation8], 0
    %26 = vsyncpa [#allocation11], 0
    // Predicated region
    $region2: #{_forward_impl.1} parent=1 // pred_check
      _
    $region3: #{_forward_impl.1} parent=1 // pred_check_branch
      %28 = sbr.rel (0) target = $region5
    $region4: #{_forward_impl.1} parent=1 // pred_region
      _
    $region5: #{_forward_impl.1} parent=1 // pred_fallthru
      _
    // Predicated region
    $region6: #{_forward_impl.1} parent=1 // pred_check
      _
    $region7: #{_forward_impl.1} parent=1 // pred_check_branch
      %30 = sbr.rel (0) target = $region9
    $region8: #{_forward_impl.1} parent=1 // pred_region
      _
    $region9: #{_forward_impl.1} parent=1 // pred_fallthru
      _
    // Predicated region
    $region10: #{_forward_impl.1} parent=1 // pred_check
      _
    $region11: #{_forward_impl.1} parent=1 // pred_check_branch
      %32 = sbr.rel (0) target = $region13
    $region12: #{_forward_impl.1} parent=1 // pred_region
      _
    $region13: #{_forward_impl.1} parent=1 // pred_fallthru
      _
    // Predicated region
    $region14: #{_forward_impl.1} parent=1 // pred_check
      _
    $region15: #{_forward_impl.1} parent=1 // pred_check_branch
      %34 = sbr.rel (0) target = $region17
    $region16: #{_forward_impl.1} parent=1 // pred_region
      _
    $region17: #{_forward_impl.1} parent=1 // pred_fallthru
      _
    // Predicated region
    $region18: #{_forward_impl.1} parent=1 // pred_check
      _
    $region19: #{_forward_impl.1} parent=1 // pred_check_branch
      %36 = sbr.rel (0) target = $region21
    $region20: #{_forward_impl.1} parent=1 // pred_region
      %s38 = ssub.s32 1024, 1024
      %39 = vsyncadd [#allocation6], %s38
      %s40 = sshll.u32 [#allocation5], 4
      %s41 = int_to_ptr.vmem [resolvable:$true] %s40
      %46 = dma.hbm_to_vmem [thread:$0]  %s5, 1024, %s41, [#allocation6], 64, 64, 4
    $region21: #{_forward_impl.1} parent=1 // pred_fallthru
      _
    // Predicated region
    $region22: #{_forward_impl.1} parent=1 // pred_check
      _
    $region23: #{_forward_impl.1} parent=1 // pred_check_branch
      %48 = sbr.rel (0) target = $region25
    $region24: #{_forward_impl.1} parent=1 // pred_region
      %s50 = ssub.s32 1024, 1024
      %51 = vsyncadd [#allocation8], %s50
      %s52 = sshll.u32 [#allocation7], 4
      %s53 = int_to_ptr.vmem [resolvable:$true] %s52
      %58 = dma.hbm_to_vmem [thread:$0]  %s6, 1024, %s53, [#allocation8], 64, 64, 4
    $region25: #{_forward_impl.1} parent=1 // pred_fallthru
      _
    // Predicated region
    $region26: #{_forward_impl.1} parent=1 // pred_check
      _
    $region27: #{_forward_impl.1} parent=1 // pred_check_branch
      %60 = sbr.rel (0) target = $region29
    $region28: #{_forward_impl.1} parent=1 // pred_region
      %s62 = ssub.s32 1024, 1024
      %63 = vsyncadd [#allocation8], %s62
      %s64 = sshll.u32 [#allocation9], 4
      %s65 = int_to_ptr.vmem [resolvable:$true] %s64
      %70 = dma.hbm_to_vmem [thread:$0]  %s7, 1024, %s65, [#allocation8], 64, 64, 4
    $region29: #{_forward_impl.1} parent=1 // pred_fallthru
      _
    // Predicated region
    $region30: #{_forward_impl.1} parent=1 // pred_check
      _
    $region31: #{_forward_impl.1} parent=1 // pred_check_branch
      %72 = sbr.rel (0) target = $region33
    $region32: #{_forward_impl.1} parent=1 // pred_region
      %s74 = ssub.s32 1024, 1024
      %75 = vsyncadd [#allocation11], %s74
      %s76 = sshll.u32 [#allocation10], 4
      %s77 = int_to_ptr.vmem [resolvable:$true] %s76
      %82 = dma.hbm_to_vmem [thread:$0]  %s8, 1024, %s77, [#allocation11], 64, 64, 4
    $region33: #{_forward_impl.1} parent=1 // pred_fallthru
      _
    // Predicated region
    $region34: #{_forward_impl.1} parent=1 // pred_check
      _
    $region35: #{_forward_impl.1} parent=1 // pred_check_branch
      %84 = sbr.rel (0) target = $region37
    $region36: #{_forward_impl.1} parent=1 // pred_region
      _
    $region37: #{_forward_impl.1} parent=1 // pred_fallthru
      _
    // Predicated region
    $region38: #{_forward_impl.1} parent=1 // pred_check
      _
    $region39: #{_forward_impl.1} parent=1 // pred_check_branch
      %86 = sbr.rel (0) target = $region41
    $region40: #{_forward_impl.1} parent=1 // pred_region
      _
    $region41: #{_forward_impl.1} parent=1 // pred_fallthru
      _
    // Predicated region
    $region42: #{_forward_impl.1} parent=1 // pred_check
      _
    $region43: #{_forward_impl.1} parent=1 // pred_check_branch
      %88 = sbr.rel (0) target = $region45
    $region44: #{_forward_impl.1} parent=1 // pred_region
      %s90 = ssub.s32 1024, 1024
      %91 = vsyncadd [#allocation11], %s90
      %s92 = sshll.u32 [#allocation12], 4
      %s93 = int_to_ptr.vmem [resolvable:$true] %s92
      %98 = dma.hbm_to_vmem [thread:$0]  %s11, 1024, %s93, [#allocation11], 64, 64, 4
    $region45: #{_forward_impl.1} parent=1 // pred_fallthru
      _
    // Predicated region
    $region46: #{_forward_impl.1} parent=1 // pred_check
      _
    $region47: #{_forward_impl.1} parent=1 // pred_check_branch
      %100 = sbr.rel (0) target = $region49
    $region48: #{_forward_impl.1} parent=1 // pred_region
      _
    $region49: #{_forward_impl.1} parent=1 // pred_fallthru
      _
    // Predicated region
    $region50: #{_forward_impl.1} parent=1 // pred_check
      _
    $region51: #{_forward_impl.1} parent=1 // pred_check_branch
      %102 = sbr.rel (0) target = $region53
    $region52: #{_forward_impl.1} parent=1 // pred_region
      %103 = dma.done [#allocation6], 1024
    $region53: #{_forward_impl.1} parent=1 // pred_fallthru
      _
    // Predicated region
    $region54: #{_forward_impl.1} parent=1 // pred_check
      _
    $region55: #{_forward_impl.1} parent=1 // pred_check_branch
      %105 = sbr.rel (0) target = $region57
    $region56: #{_forward_impl.1} parent=1 // pred_region
      %106 = dma.done [#allocation8], 1024
    $region57: #{_forward_impl.1} parent=1 // pred_fallthru
      _
    // Predicated region
    $region58: #{_forward_impl.1} parent=1 // pred_check
      _
    $region59: #{_forward_impl.1} parent=1 // pred_check_branch
      %108 = sbr.rel (0) target = $region61
    $region60: #{_forward_impl.1} parent=1 // pred_region
      %109 = dma.done [#allocation8], 1024
    $region61: #{_forward_impl.1} parent=1 // pred_fallthru
      _
    // Predicated region
    $region62: #{_forward_impl.1} parent=1 // pred_check
      _
    $region63: #{_forward_impl.1} parent=1 // pred_check_branch
      %111 = sbr.rel (0) target = $region65
    $region64: #{_forward_impl.1} parent=1 // pred_region
      %112 = dma.done [#allocation11], 1024
    $region65: #{_forward_impl.1} parent=1 // pred_fallthru
      _
    // Predicated region
    $region66: #{_forward_impl.1} parent=1 // pred_check
      _
    $region67: #{_forward_impl.1} parent=1 // pred_check_branch
      %114 = sbr.rel (0) target = $region69
    $region68: #{_forward_impl.1} parent=1 // pred_region
      %115 = dma.done [#allocation11], 1024
    $region69: #{_forward_impl.1} parent=1 // pred_fallthru
      _
    %p117 = scmp.eq.s32.totalorder 0, 0
    // Predicated region
    $region70: #{_forward_impl.1} parent=1 // pred_check
      %p118 = pneg %p117
    $region71: #{_forward_impl.1} parent=1 // pred_check_branch
      %120 = sbr.rel (%p118) target = $region73
    $region72: #{_forward_impl.1} parent=1 // pred_region
      %s121 = sld [smem:[#allocation4]]
      %v122 = vld [vmem:[%s1] sm:$0x1]
      %v123 = vunpack.c.l.bf16 %v122
      %v124 = vld [vmem:[%s2] sm:$0xf]
      %v125 = vld [vmem:[%s2 + $0x4] sm:$0xf]
      %v126 = vld [vmem:[%s2 + $0x8] sm:$0xf]
      %v127 = vld [vmem:[%s2 + $0xc] sm:$0xf]
      %v128 = vld [vmem:[%s2 + $0x10] sm:$0xf]
      %v129 = vld [vmem:[%s2 + $0x14] sm:$0xf]
      %v130 = vld [vmem:[%s2 + $0x18] sm:$0xf]
      %v131 = vld [vmem:[%s2 + $0x1c] sm:$0xf]
      %v132 = vld [vmem:[%s2 + $0x20] sm:$0xf]
      %v133 = vld [vmem:[%s2 + $0x24] sm:$0xf]
      %v134 = vld [vmem:[%s2 + $0x28] sm:$0xf]
      %v135 = vld [vmem:[%s2 + $0x2c] sm:$0xf]
      %v136 = vld [vmem:[%s2 + $0x30] sm:$0xf]
      %v137 = vld [vmem:[%s2 + $0x34] sm:$0xf]
      %v138 = vld [vmem:[%s2 + $0x38] sm:$0xf]
      %v139 = vld [vmem:[%s2 + $0x3c] sm:$0xf]
      %v140 = vunpack.c.l.bf16 %v124
      %v141 = vunpack.c.l.bf16 %v125
      %v142 = vunpack.c.l.bf16 %v126
      %v143 = vunpack.c.l.bf16 %v127
      %v144 = vunpack.c.l.bf16 %v128
      %v145 = vunpack.c.l.bf16 %v129
      %v146 = vunpack.c.l.bf16 %v130
      %v147 = vunpack.c.l.bf16 %v131
      %v148 = vunpack.c.l.bf16 %v132
      %v149 = vunpack.c.l.bf16 %v133
      %v150 = vunpack.c.l.bf16 %v134
      %v151 = vunpack.c.l.bf16 %v135
      %v152 = vunpack.c.l.bf16 %v136
      %v153 = vunpack.c.l.bf16 %v137
      %v154 = vunpack.c.l.bf16 %v138
      %v155 = vunpack.c.l.bf16 %v139
      %v156 = vld [vmem:[%s3] sm:$0xf]
      %v157 = vld [vmem:[%s3 + $0x4] sm:$0xf]
      %v158 = vld [vmem:[%s3 + $0x8] sm:$0xf]
      %v159 = vld [vmem:[%s3 + $0xc] sm:$0xf]
      %v160 = vld [vmem:[%s3 + $0x10] sm:$0xf]
      %v161 = vld [vmem:[%s3 + $0x14] sm:$0xf]
      %v162 = vld [vmem:[%s3 + $0x18] sm:$0xf]
      %v163 = vld [vmem:[%s3 + $0x1c] sm:$0xf]
      %v164 = vld [vmem:[%s3 + $0x20] sm:$0xf]
      %v165 = vld [vmem:[%s3 + $0x24] sm:$0xf]
      %v166 = vld [vmem:[%s3 + $0x28] sm:$0xf]
      %v167 = vld [vmem:[%s3 + $0x2c] sm:$0xf]
      %v168 = vld [vmem:[%s3 + $0x30] sm:$0xf]
      %v169 = vld [vmem:[%s3 + $0x34] sm:$0xf]
      %v170 = vld [vmem:[%s3 + $0x38] sm:$0xf]
      %v171 = vld [vmem:[%s3 + $0x3c] sm:$0xf]
      %v172 = vunpack.c.l.bf16 %v156
      %v173 = vunpack.c.l.bf16 %v157
      %v174 = vunpack.c.l.bf16 %v158
      %v175 = vunpack.c.l.bf16 %v159
      %v176 = vunpack.c.l.bf16 %v160
      %v177 = vunpack.c.l.bf16 %v161
      %v178 = vunpack.c.l.bf16 %v162
      %v179 = vunpack.c.l.bf16 %v163
      %v180 = vunpack.c.l.bf16 %v164
      %v181 = vunpack.c.l.bf16 %v165
      %v182 = vunpack.c.l.bf16 %v166
      %v183 = vunpack.c.l.bf16 %v167
      %v184 = vunpack.c.l.bf16 %v168
      %v185 = vunpack.c.l.bf16 %v169
      %v186 = vunpack.c.l.bf16 %v170
      %v187 = vunpack.c.l.bf16 %v171
      %188 = vmatprep.subr.mxu0 0.0
      %189 = vmatpush1.msra.mxu0 %v187
      %190 = vmatprep.subr.mxu0 0.0
      %191 = vmatpush1.msra.mxu0 %v186
      %192 = vmatprep.subr.mxu0 0.0
      %193 = vmatpush1.msra.mxu0 %v185
      %194 = vmatprep.subr.mxu0 0.0
      %195 = vmatpush1.msra.mxu0 %v184
      %196 = vmatprep.subr.mxu0 0.0
      %197 = vmatpush1.msra.mxu0 %v183
      %198 = vmatprep.subr.mxu0 0.0
      %199 = vmatpush1.msra.mxu0 %v182
      %200 = vmatprep.subr.mxu0 0.0
      %201 = vmatpush1.msra.mxu0 %v181
      %202 = vmatprep.subr.mxu0 0.0
      %203 = vmatpush1.msra.mxu0 %v180
      %204 = vmatprep.subr.mxu0 0.0
      %205 = vmatpush1.msra.mxu0 %v179
      %206 = vmatprep.subr.mxu0 0.0
      %207 = vmatpush1.msra.mxu0 %v178
      %208 = vmatprep.subr.mxu0 0.0
      %209 = vmatpush1.msra.mxu0 %v177
      %210 = vmatprep.subr.mxu0 0.0
      %211 = vmatpush1.msra.mxu0 %v176
      %212 = vmatprep.subr.mxu0 0.0
      %213 = vmatpush1.msra.mxu0 %v175
      %214 = vmatprep.subr.mxu0 0.0
      %215 = vmatpush1.msra.mxu0 %v174
      %216 = vmatprep.subr.mxu0 0.0
      %217 = vmatpush1.msra.mxu0 %v173
      %218 = vmatprep.subr.mxu0 0.0
      %219 = vmatpush1.msra.mxu0 %v172
      %220 = vmatprep.subr.mxu0 0.0
      %221 = vmatpush2.msra.mxu0 0.0
      %222 = vmatprep.subr.mxu0 0.0
      %223 = vmatpush2.msra.mxu0 0.0
      %224 = vmatprep.subr.mxu0 0.0
      %225 = vmatpush2.msra.mxu0 0.0
      %226 = vmatprep.subr.mxu0 0.0
      %227 = vmatpush2.msra.mxu0 0.0
      %228 = vmatprep.subr.mxu0 0.0
      %229 = vmatpush2.msra.mxu0 0.0
      %230 = vmatprep.subr.mxu0 0.0
      %231 = vmatpush2.msra.mxu0 0.0
      %232 = vmatprep.subr.mxu0 0.0
      %233 = vmatpush2.msra.mxu0 0.0
      %234 = vmatprep.subr.mxu0 0.0
      %235 = vmatpush2.msra.mxu0 0.0
      %236 = vmatprep.subr.mxu0 0.0
      %237 = vmatpush2.msra.mxu0 0.0
      %238 = vmatprep.subr.mxu0 0.0
      %239 = vmatpush2.msra.mxu0 0.0
      %240 = vmatprep.subr.mxu0 0.0
      %241 = vmatpush2.msra.mxu0 0.0
      %242 = vmatprep.subr.mxu0 0.0
      %243 = vmatpush2.msra.mxu0 0.0
      %244 = vmatprep.subr.mxu0 0.0
      %245 = vmatpush2.msra.mxu0 0.0
      %246 = vmatprep.subr.mxu0 0.0
      %247 = vmatpush2.msra.mxu0 0.0
      %248 = vmatprep.subr.mxu0 0.0
      %249 = vmatpush2.msra.mxu0 0.0
      %250 = vmatprep.subr.mxu0 0.0
      %251 = vmatpush2.msra.mxu0 0.0
      %252 = vmatprep.mubr.f32.mxu0 0.0
      %253 = vmatmul.mubr.f32.gmra.mxu0 %v123
      %v254 = vpop.f32.mrf.mxu0
      %v255 = vadd.f32 0.0, %v254
      %v256 = vpop.f32.mrf.mxu0
      %257 = vdwg.mxu0
      %v258 = vld [vmem:[%s4] sm:$0xf]
      %v259 = vld [vmem:[%s4 + $0x4] sm:$0xf]
      %v260 = vld [vmem:[%s4 + $0x8] sm:$0xf]
      %v261 = vld [vmem:[%s4 + $0xc] sm:$0xf]
      %v262 = vld [vmem:[%s4 + $0x10] sm:$0xf]
      %v263 = vld [vmem:[%s4 + $0x14] sm:$0xf]
      %v264 = vld [vmem:[%s4 + $0x18] sm:$0xf]
      %v265 = vld [vmem:[%s4 + $0x1c] sm:$0xf]
      %v266 = vld [vmem:[%s4 + $0x20] sm:$0xf]
      %v267 = vld [vmem:[%s4 + $0x24] sm:$0xf]
      %v268 = vld [vmem:[%s4 + $0x28] sm:$0xf]
      %v269 = vld [vmem:[%s4 + $0x2c] sm:$0xf]
      %v270 = vld [vmem:[%s4 + $0x30] sm:$0xf]
      %v271 = vld [vmem:[%s4 + $0x34] sm:$0xf]
      %v272 = vld [vmem:[%s4 + $0x38] sm:$0xf]
      %v273 = vld [vmem:[%s4 + $0x3c] sm:$0xf]
      %v274 = vunpack.c.l.bf16 %v258
      %v275 = vunpack.c.l.bf16 %v259
      %v276 = vunpack.c.l.bf16 %v260
      %v277 = vunpack.c.l.bf16 %v261
      %v278 = vunpack.c.l.bf16 %v262
      %v279 = vunpack.c.l.bf16 %v263
      %v280 = vunpack.c.l.bf16 %v264
      %v281 = vunpack.c.l.bf16 %v265
      %v282 = vunpack.c.l.bf16 %v266
      %v283 = vunpack.c.l.bf16 %v267
      %v284 = vunpack.c.l.bf16 %v268
      %v285 = vunpack.c.l.bf16 %v269
      %v286 = vunpack.c.l.bf16 %v270
      %v287 = vunpack.c.l.bf16 %v271
      %v288 = vunpack.c.l.bf16 %v272
      %v289 = vunpack.c.l.bf16 %v273
      %290 = vmatprep.subr.mxu0 0.0
      %291 = vmatpush1.msra.mxu0 %v289
      %292 = vmatprep.subr.mxu0 0.0
      %293 = vmatpush1.msra.mxu0 %v288
      %294 = vmatprep.subr.mxu0 0.0
      %295 = vmatpush1.msra.mxu0 %v287
      %296 = vmatprep.subr.mxu0 0.0
      %297 = vmatpush1.msra.mxu0 %v286
      %298 = vmatprep.subr.mxu0 0.0
      %299 = vmatpush1.msra.mxu0 %v285
      %300 = vmatprep.subr.mxu0 0.0
      %301 = vmatpush1.msra.mxu0 %v284
      %302 = vmatprep.subr.mxu0 0.0
      %303 = vmatpush1.msra.mxu0 %v283
      %304 = vmatprep.subr.mxu0 0.0
      %305 = vmatpush1.msra.mxu0 %v282
      %306 = vmatprep.subr.mxu0 0.0
      %307 = vmatpush1.msra.mxu0 %v281
      %308 = vmatprep.subr.mxu0 0.0
      %309 = vmatpush1.msra.mxu0 %v280
      %310 = vmatprep.subr.mxu0 0.0
      %311 = vmatpush1.msra.mxu0 %v279
      %312 = vmatprep.subr.mxu0 0.0
      %313 = vmatpush1.msra.mxu0 %v278
      %314 = vmatprep.subr.mxu0 0.0
      %315 = vmatpush1.msra.mxu0 %v277
      %316 = vmatprep.subr.mxu0 0.0
      %317 = vmatpush1.msra.mxu0 %v276
      %318 = vmatprep.subr.mxu0 0.0
      %319 = vmatpush1.msra.mxu0 %v275
      %320 = vmatprep.subr.mxu0 0.0
      %321 = vmatpush1.msra.mxu0 %v274
      %322 = vmatprep.subr.mxu0 0.0
      %323 = vmatpush2.msra.mxu0 0.0
      %324 = vmatprep.subr.mxu0 0.0
      %325 = vmatpush2.msra.mxu0 0.0
      %326 = vmatprep.subr.mxu0 0.0
      %327 = vmatpush2.msra.mxu0 0.0
      %328 = vmatprep.subr.mxu0 0.0
      %329 = vmatpush2.msra.mxu0 0.0
      %330 = vmatprep.subr.mxu0 0.0
      %331 = vmatpush2.msra.mxu0 0.0
      %332 = vmatprep.subr.mxu0 0.0
      %333 = vmatpush2.msra.mxu0 0.0
      %334 = vmatprep.subr.mxu0 0.0
      %335 = vmatpush2.msra.mxu0 0.0
      %336 = vmatprep.subr.mxu0 0.0
      %337 = vmatpush2.msra.mxu0 0.0
      %338 = vmatprep.subr.mxu0 0.0
      %339 = vmatpush2.msra.mxu0 0.0
      %340 = vmatprep.subr.mxu0 0.0
      %341 = vmatpush2.msra.mxu0 0.0
      %342 = vmatprep.subr.mxu0 0.0
      %343 = vmatpush2.msra.mxu0 0.0
      %344 = vmatprep.subr.mxu0 0.0
      %345 = vmatpush2.msra.mxu0 0.0
      %346 = vmatprep.subr.mxu0 0.0
      %347 = vmatpush2.msra.mxu0 0.0
      %348 = vmatprep.subr.mxu0 0.0
      %349 = vmatpush2.msra.mxu0 0.0
      %350 = vmatprep.subr.mxu0 0.0
      %351 = vmatpush2.msra.mxu0 0.0
      %352 = vmatprep.subr.mxu0 0.0
      %353 = vmatpush2.msra.mxu0 0.0
      %354 = vmatprep.mubr.f32.mxu0 0.0
      %355 = vmatmul.mubr.f32.gmra.mxu0 %v255
      %v356 = vpop.f32.mrf.mxu0
      %v357 = vadd.f32 0.0, %v356
      %v358 = vpop.f32.mrf.mxu0
      %359 = vdwg.mxu0
      %360 = vmatprep.subr.mxu0 0.0
      %361 = vmatpush1.xpose.msra.mxu0 %v155
      %362 = vmatprep.subr.mxu0 0.0
      %363 = vmatpush1.xpose.msra.mxu0 %v154
      %364 = vmatprep.subr.mxu0 0.0
      %365 = vmatpush1.xpose.msra.mxu0 %v153
      %366 = vmatprep.subr.mxu0 0.0
      %367 = vmatpush1.xpose.msra.mxu0 %v152
      %368 = vmatprep.subr.mxu0 0.0
      %369 = vmatpush1.xpose.msra.mxu0 %v151
      %370 = vmatprep.subr.mxu0 0.0
      %371 = vmatpush1.xpose.msra.mxu0 %v150
      %372 = vmatprep.subr.mxu0 0.0
      %373 = vmatpush1.xpose.msra.mxu0 %v149
      %374 = vmatprep.subr.mxu0 0.0
      %375 = vmatpush1.xpose.msra.mxu0 %v148
      %376 = vmatprep.subr.mxu0 0.0
      %377 = vmatpush1.xpose.msra.mxu0 %v147
      %378 = vmatprep.subr.mxu0 0.0
      %379 = vmatpush1.xpose.msra.mxu0 %v146
      %380 = vmatprep.subr.mxu0 0.0
      %381 = vmatpush1.xpose.msra.mxu0 %v145
      %382 = vmatprep.subr.mxu0 0.0
      %383 = vmatpush1.xpose.msra.mxu0 %v144
      %384 = vmatprep.subr.mxu0 0.0
      %385 = vmatpush1.xpose.msra.mxu0 %v143
      %386 = vmatprep.subr.mxu0 0.0
      %387 = vmatpush1.xpose.msra.mxu0 %v142
      %388 = vmatprep.subr.mxu0 0.0
      %389 = vmatpush1.xpose.msra.mxu0 %v141
      %390 = vmatprep.subr.mxu0 0.0
      %391 = vmatpush1.xpose.msra.mxu0 %v140
      %392 = vmatprep.subr.mxu0 0.0
      %393 = vmatpush2.xpose.msra.mxu0 0.0
      %394 = vmatprep.subr.mxu0 0.0
      %395 = vmatpush2.xpose.msra.mxu0 0.0
      %396 = vmatprep.subr.mxu0 0.0
      %397 = vmatpush2.xpose.msra.mxu0 0.0
      %398 = vmatprep.subr.mxu0 0.0
      %399 = vmatpush2.xpose.msra.mxu0 0.0
      %400 = vmatprep.subr.mxu0 0.0
      %401 = vmatpush2.xpose.msra.mxu0 0.0
      %402 = vmatprep.subr.mxu0 0.0
      %403 = vmatpush2.xpose.msra.mxu0 0.0
      %404 = vmatprep.subr.mxu0 0.0
      %405 = vmatpush2.xpose.msra.mxu0 0.0
      %406 = vmatprep.subr.mxu0 0.0
      %407 = vmatpush2.xpose.msra.mxu0 0.0
      %408 = vmatprep.subr.mxu0 0.0
      %409 = vmatpush2.xpose.msra.mxu0 0.0
      %410 = vmatprep.subr.mxu0 0.0
      %411 = vmatpush2.xpose.msra.mxu0 0.0
      %412 = vmatprep.subr.mxu0 0.0
      %413 = vmatpush2.xpose.msra.mxu0 0.0
      %414 = vmatprep.subr.mxu0 0.0
      %415 = vmatpush2.xpose.msra.mxu0 0.0
      %416 = vmatprep.subr.mxu0 0.0
      %417 = vmatpush2.xpose.msra.mxu0 0.0
      %418 = vmatprep.subr.mxu0 0.0
      %419 = vmatpush2.xpose.msra.mxu0 0.0
      %420 = vmatprep.subr.mxu0 0.0
      %421 = vmatpush2.xpose.msra.mxu0 0.0
      %422 = vmatprep.subr.mxu0 0.0
      %423 = vmatpush2.xpose.msra.mxu0 0.0
      %424 = vmatprep.mubr.f32.mxu0 0.0
      %425 = vmatmul.mubr.f32.gmra.mxu0 %v357
      %v426 = vpop.f32.mrf.mxu0
      %v427 = vadd.f32 0.0, %v426
      %v428 = vpop.f32.mrf.mxu0
      %429 = vdwg.mxu0
      %v430 = vlaneseq
      %v431 = vand.u32 %v430, 127
      %v432 = vstv %s121
      %vm433 = vcmp.lt.s32.totalorder %v431, %v432
      %v434 = vsel %vm433, %v427, -1e+30
      %vm435 = vcmask 1040384
      %v436 = vsel %vm435, %v434, -inf
      %437 = vmax.xlane.f32.xlu0 %v436
      %v438 = vpop.xlane.xlu0 %437
      %v439 = vsub.f32 %v434, %v438
      %v440 = vmul.f32 %v439, 1.442695
      %v441 = vpow.pop %v440
      %v442 = vsel %vm435, %v441, 0.0
      %443 = vadd.xlane.f32.xlu0 %v442
      %v444 = vpop.xlane.xlu0 %443
      %v445 = vrcp.pop %v444
      %v446 = vmul.f32 %v441, %v445
      %447 = vmatprep.subr.mxu0 0.0
      %448 = vmatpush1.msra.mxu0 %v155
      %449 = vmatprep.subr.mxu0 0.0
      %450 = vmatpush1.msra.mxu0 %v154
      %451 = vmatprep.subr.mxu0 0.0
      %452 = vmatpush1.msra.mxu0 %v153
      %453 = vmatprep.subr.mxu0 0.0
      %454 = vmatpush1.msra.mxu0 %v152
      %455 = vmatprep.subr.mxu0 0.0
      %456 = vmatpush1.msra.mxu0 %v151
      %457 = vmatprep.subr.mxu0 0.0
      %458 = vmatpush1.msra.mxu0 %v150
      %459 = vmatprep.subr.mxu0 0.0
      %460 = vmatpush1.msra.mxu0 %v149
      %461 = vmatprep.subr.mxu0 0.0
      %462 = vmatpush1.msra.mxu0 %v148
      %463 = vmatprep.subr.mxu0 0.0
      %464 = vmatpush1.msra.mxu0 %v147
      %465 = vmatprep.subr.mxu0 0.0
      %466 = vmatpush1.msra.mxu0 %v146
      %467 = vmatprep.subr.mxu0 0.0
      %468 = vmatpush1.msra.mxu0 %v145
      %469 = vmatprep.subr.mxu0 0.0
      %470 = vmatpush1.msra.mxu0 %v144
      %471 = vmatprep.subr.mxu0 0.0
      %472 = vmatpush1.msra.mxu0 %v143
      %473 = vmatprep.subr.mxu0 0.0
      %474 = vmatpush1.msra.mxu0 %v142
      %475 = vmatprep.subr.mxu0 0.0
      %476 = vmatpush1.msra.mxu0 %v141
      %477 = vmatprep.subr.mxu0 0.0
      %478 = vmatpush1.msra.mxu0 %v140
      %479 = vmatprep.subr.mxu0 0.0
      %480 = vmatpush2.msra.mxu0 0.0
      %481 = vmatprep.subr.mxu0 0.0
      %482 = vmatpush2.msra.mxu0 0.0
      %483 = vmatprep.subr.mxu0 0.0
      %484 = vmatpush2.msra.mxu0 0.0
      %485 = vmatprep.subr.mxu0 0.0
      %486 = vmatpush2.msra.mxu0 0.0
      %487 = vmatprep.subr.mxu0 0.0
      %488 = vmatpush2.msra.mxu0 0.0
      %489 = vmatprep.subr.mxu0 0.0
      %490 = vmatpush2.msra.mxu0 0.0
      %491 = vmatprep.subr.mxu0 0.0
      %492 = vmatpush2.msra.mxu0 0.0
      %493 = vmatprep.subr.mxu0 0.0
      %494 = vmatpush2.msra.mxu0 0.0
      %495 = vmatprep.subr.mxu0 0.0
      %496 = vmatpush2.msra.mxu0 0.0
      %497 = vmatprep.subr.mxu0 0.0
      %498 = vmatpush2.msra.mxu0 0.0
      %499 = vmatprep.subr.mxu0 0.0
      %500 = vmatpush2.msra.mxu0 0.0
      %501 = vmatprep.subr.mxu0 0.0
      %502 = vmatpush2.msra.mxu0 0.0
      %503 = vmatprep.subr.mxu0 0.0
      %504 = vmatpush2.msra.mxu0 0.0
      %505 = vmatprep.subr.mxu0 0.0
      %506 = vmatpush2.msra.mxu0 0.0
      %507 = vmatprep.subr.mxu0 0.0
      %508 = vmatpush2.msra.mxu0 0.0
      %509 = vmatprep.subr.mxu0 0.0
      %510 = vmatpush2.msra.mxu0 0.0
      %511 = vmatprep.mubr.f32.mxu0 0.0
      %512 = vmatmul.mubr.f32.gmra.mxu0 %v446
      %v513 = vpop.f32.mrf.mxu0
      %v514 = vadd.f32 0.0, %v513
      %v515 = vpop.f32.mrf.mxu0
      %516 = vdwg.mxu0
      %v517 = vld [vmem:[#allocation5] sm:$0xf]
      %v518 = vld [vmem:[#allocation5 + $0x4] sm:$0xf]
      %v519 = vld [vmem:[#allocation5 + $0x8] sm:$0xf]
      %v520 = vld [vmem:[#allocation5 + $0xc] sm:$0xf]
      %v521 = vld [vmem:[#allocation5 + $0x10] sm:$0xf]
      %v522 = vld [vmem:[#allocation5 + $0x14] sm:$0xf]
      %v523 = vld [vmem:[#allocation5 + $0x18] sm:$0xf]
      %v524 = vld [vmem:[#allocation5 + $0x1c] sm:$0xf]
      %v525 = vld [vmem:[#allocation5 + $0x20] sm:$0xf]
      %v526 = vld [vmem:[#allocation5 + $0x24] sm:$0xf]
      %v527 = vld [vmem:[#allocation5 + $0x28] sm:$0xf]
      %v528 = vld [vmem:[#allocation5 + $0x2c] sm:$0xf]
      %v529 = vld [vmem:[#allocation5 + $0x30] sm:$0xf]
      %v530 = vld [vmem:[#allocation5 + $0x34] sm:$0xf]
      %v531 = vld [vmem:[#allocation5 + $0x38] sm:$0xf]
      %v532 = vld [vmem:[#allocation5 + $0x3c] sm:$0xf]
      %v533 = vunpack.c.l.bf16 %v517
      %v534 = vunpack.c.l.bf16 %v518
      %v535 = vunpack.c.l.bf16 %v519
      %v536 = vunpack.c.l.bf16 %v520
      %v537 = vunpack.c.l.bf16 %v521
      %v538 = vunpack.c.l.bf16 %v522
      %v539 = vunpack.c.l.bf16 %v523
      %v540 = vunpack.c.l.bf16 %v524
      %v541 = vunpack.c.l.bf16 %v525
      %v542 = vunpack.c.l.bf16 %v526
      %v543 = vunpack.c.l.bf16 %v527
      %v544 = vunpack.c.l.bf16 %v528
      %v545 = vunpack.c.l.bf16 %v529
      %v546 = vunpack.c.l.bf16 %v530
      %v547 = vunpack.c.l.bf16 %v531
      %v548 = vunpack.c.l.bf16 %v532
      %549 = vmatprep.subr.mxu0 0.0
      %550 = vmatpush1.msra.mxu0 %v548
      %551 = vmatprep.subr.mxu0 0.0
      %552 = vmatpush1.msra.mxu0 %v547
      %553 = vmatprep.subr.mxu0 0.0
      %554 = vmatpush1.msra.mxu0 %v546
      %555 = vmatprep.subr.mxu0 0.0
      %556 = vmatpush1.msra.mxu0 %v545
      %557 = vmatprep.subr.mxu0 0.0
      %558 = vmatpush1.msra.mxu0 %v544
      %559 = vmatprep.subr.mxu0 0.0
      %560 = vmatpush1.msra.mxu0 %v543
      %561 = vmatprep.subr.mxu0 0.0
      %562 = vmatpush1.msra.mxu0 %v542
      %563 = vmatprep.subr.mxu0 0.0
      %564 = vmatpush1.msra.mxu0 %v541
      %565 = vmatprep.subr.mxu0 0.0
      %566 = vmatpush1.msra.mxu0 %v540
      %567 = vmatprep.subr.mxu0 0.0
      %568 = vmatpush1.msra.mxu0 %v539
      %569 = vmatprep.subr.mxu0 0.0
      %570 = vmatpush1.msra.mxu0 %v538
      %571 = vmatprep.subr.mxu0 0.0
      %572 = vmatpush1.msra.mxu0 %v537
      %573 = vmatprep.subr.mxu0 0.0
      %574 = vmatpush1.msra.mxu0 %v536
      %575 = vmatprep.subr.mxu0 0.0
      %576 = vmatpush1.msra.mxu0 %v535
      %577 = vmatprep.subr.mxu0 0.0
      %578 = vmatpush1.msra.mxu0 %v534
      %579 = vmatprep.subr.mxu0 0.0
      %580 = vmatpush1.msra.mxu0 %v533
      %581 = vmatprep.subr.mxu0 0.0
      %582 = vmatpush2.msra.mxu0 0.0
      %583 = vmatprep.subr.mxu0 0.0
      %584 = vmatpush2.msra.mxu0 0.0
      %585 = vmatprep.subr.mxu0 0.0
      %586 = vmatpush2.msra.mxu0 0.0
      %587 = vmatprep.subr.mxu0 0.0
      %588 = vmatpush2.msra.mxu0 0.0
      %589 = vmatprep.subr.mxu0 0.0
      %590 = vmatpush2.msra.mxu0 0.0
      %591 = vmatprep.subr.mxu0 0.0
      %592 = vmatpush2.msra.mxu0 0.0
      %593 = vmatprep.subr.mxu0 0.0
      %594 = vmatpush2.msra.mxu0 0.0
      %595 = vmatprep.subr.mxu0 0.0
      %596 = vmatpush2.msra.mxu0 0.0
      %597 = vmatprep.subr.mxu0 0.0
      %598 = vmatpush2.msra.mxu0 0.0
      %599 = vmatprep.subr.mxu0 0.0
      %600 = vmatpush2.msra.mxu0 0.0
      %601 = vmatprep.subr.mxu0 0.0
      %602 = vmatpush2.msra.mxu0 0.0
      %603 = vmatprep.subr.mxu0 0.0
      %604 = vmatpush2.msra.mxu0 0.0
      %605 = vmatprep.subr.mxu0 0.0
      %606 = vmatpush2.msra.mxu0 0.0
      %607 = vmatprep.subr.mxu0 0.0
      %608 = vmatpush2.msra.mxu0 0.0
      %609 = vmatprep.subr.mxu0 0.0
      %610 = vmatpush2.msra.mxu0 0.0
      %611 = vmatprep.subr.mxu0 0.0
      %612 = vmatpush2.msra.mxu0 0.0
      %613 = vmatprep.mubr.f32.mxu0 0.0
      %614 = vmatmul.mubr.f32.gmra.mxu0 %v514
      %v615 = vpop.f32.mrf.mxu0
      %v616 = vadd.f32 0.0, %v615
      %v617 = vpop.f32.mrf.mxu0
      %618 = vdwg.mxu0
      %v619 = vld [vmem:[#allocation7] sm:$0xf]
      %v620 = vld [vmem:[#allocation7 + $0x4] sm:$0xf]
      %v621 = vld [vmem:[#allocation7 + $0x8] sm:$0xf]
      %v622 = vld [vmem:[#allocation7 + $0xc] sm:$0xf]
      %v623 = vld [vmem:[#allocation7 + $0x10] sm:$0xf]
      %v624 = vld [vmem:[#allocation7 + $0x14] sm:$0xf]
      %v625 = vld [vmem:[#allocation7 + $0x18] sm:$0xf]
      %v626 = vld [vmem:[#allocation7 + $0x1c] sm:$0xf]
      %v627 = vld [vmem:[#allocation7 + $0x20] sm:$0xf]
      %v628 = vld [vmem:[#allocation7 + $0x24] sm:$0xf]
      %v629 = vld [vmem:[#allocation7 + $0x28] sm:$0xf]
      %v630 = vld [vmem:[#allocation7 + $0x2c] sm:$0xf]
      %v631 = vld [vmem:[#allocation7 + $0x30] sm:$0xf]
      %v632 = vld [vmem:[#allocation7 + $0x34] sm:$0xf]
      %v633 = vld [vmem:[#allocation7 + $0x38] sm:$0xf]
      %v634 = vld [vmem:[#allocation7 + $0x3c] sm:$0xf]
      %v635 = vunpack.c.l.bf16 %v619
      %v636 = vunpack.c.l.bf16 %v620
      %v637 = vunpack.c.l.bf16 %v621
      %v638 = vunpack.c.l.bf16 %v622
      %v639 = vunpack.c.l.bf16 %v623
      %v640 = vunpack.c.l.bf16 %v624
      %v641 = vunpack.c.l.bf16 %v625
      %v642 = vunpack.c.l.bf16 %v626
      %v643 = vunpack.c.l.bf16 %v627
      %v644 = vunpack.c.l.bf16 %v628
      %v645 = vunpack.c.l.bf16 %v629
      %v646 = vunpack.c.l.bf16 %v630
      %v647 = vunpack.c.l.bf16 %v631
      %v648 = vunpack.c.l.bf16 %v632
      %v649 = vunpack.c.l.bf16 %v633
      %v650 = vunpack.c.l.bf16 %v634
      %v651 = vld [vmem:[#allocation9] sm:$0xf]
      %v652 = vld [vmem:[#allocation9 + $0x4] sm:$0xf]
      %v653 = vld [vmem:[#allocation9 + $0x8] sm:$0xf]
      %v654 = vld [vmem:[#allocation9 + $0xc] sm:$0xf]
      %v655 = vld [vmem:[#allocation9 + $0x10] sm:$0xf]
      %v656 = vld [vmem:[#allocation9 + $0x14] sm:$0xf]
      %v657 = vld [vmem:[#allocation9 + $0x18] sm:$0xf]
      %v658 = vld [vmem:[#allocation9 + $0x1c] sm:$0xf]
      %v659 = vld [vmem:[#allocation9 + $0x20] sm:$0xf]
      %v660 = vld [vmem:[#allocation9 + $0x24] sm:$0xf]
      %v661 = vld [vmem:[#allocation9 + $0x28] sm:$0xf]
      %v662 = vld [vmem:[#allocation9 + $0x2c] sm:$0xf]
      %v663 = vld [vmem:[#allocation9 + $0x30] sm:$0xf]
      %v664 = vld [vmem:[#allocation9 + $0x34] sm:$0xf]
      %v665 = vld [vmem:[#allocation9 + $0x38] sm:$0xf]
      %v666 = vld [vmem:[#allocation9 + $0x3c] sm:$0xf]
      %v667 = vunpack.c.l.bf16 %v651
      %v668 = vunpack.c.l.bf16 %v652
      %v669 = vunpack.c.l.bf16 %v653
      %v670 = vunpack.c.l.bf16 %v654
      %v671 = vunpack.c.l.bf16 %v655
      %v672 = vunpack.c.l.bf16 %v656
      %v673 = vunpack.c.l.bf16 %v657
      %v674 = vunpack.c.l.bf16 %v658
      %v675 = vunpack.c.l.bf16 %v659
      %v676 = vunpack.c.l.bf16 %v660
      %v677 = vunpack.c.l.bf16 %v661
      %v678 = vunpack.c.l.bf16 %v662
      %v679 = vunpack.c.l.bf16 %v663
      %v680 = vunpack.c.l.bf16 %v664
      %v681 = vunpack.c.l.bf16 %v665
      %v682 = vunpack.c.l.bf16 %v666
      %683 = vmatprep.subr.mxu0 0.0
      %684 = vmatpush1.msra.mxu0 %v682
      %685 = vmatprep.subr.mxu0 0.0
      %686 = vmatpush1.msra.mxu0 %v681
      %687 = vmatprep.subr.mxu0 0.0
      %688 = vmatpush1.msra.mxu0 %v680
      %689 = vmatprep.subr.mxu0 0.0
      %690 = vmatpush1.msra.mxu0 %v679
      %691 = vmatprep.subr.mxu0 0.0
      %692 = vmatpush1.msra.mxu0 %v678
      %693 = vmatprep.subr.mxu0 0.0
      %694 = vmatpush1.msra.mxu0 %v677
      %695 = vmatprep.subr.mxu0 0.0
      %696 = vmatpush1.msra.mxu0 %v676
      %697 = vmatprep.subr.mxu0 0.0
      %698 = vmatpush1.msra.mxu0 %v675
      %699 = vmatprep.subr.mxu0 0.0
      %700 = vmatpush1.msra.mxu0 %v674
      %701 = vmatprep.subr.mxu0 0.0
      %702 = vmatpush1.msra.mxu0 %v673
      %703 = vmatprep.subr.mxu0 0.0
      %704 = vmatpush1.msra.mxu0 %v672
      %705 = vmatprep.subr.mxu0 0.0
      %706 = vmatpush1.msra.mxu0 %v671
      %707 = vmatprep.subr.mxu0 0.0
      %708 = vmatpush1.msra.mxu0 %v670
      %709 = vmatprep.subr.mxu0 0.0
      %710 = vmatpush1.msra.mxu0 %v669
      %711 = vmatprep.subr.mxu0 0.0
      %712 = vmatpush1.msra.mxu0 %v668
      %713 = vmatprep.subr.mxu0 0.0
      %714 = vmatpush1.msra.mxu0 %v667
      %715 = vmatprep.subr.mxu0 0.0
      %716 = vmatpush2.msra.mxu0 0.0
      %717 = vmatprep.subr.mxu0 0.0
      %718 = vmatpush2.msra.mxu0 0.0
      %719 = vmatprep.subr.mxu0 0.0
      %720 = vmatpush2.msra.mxu0 0.0
      %721 = vmatprep.subr.mxu0 0.0
      %722 = vmatpush2.msra.mxu0 0.0
      %723 = vmatprep.subr.mxu0 0.0
      %724 = vmatpush2.msra.mxu0 0.0
      %725 = vmatprep.subr.mxu0 0.0
      %726 = vmatpush2.msra.mxu0 0.0
      %727 = vmatprep.subr.mxu0 0.0
      %728 = vmatpush2.msra.mxu0 0.0
      %729 = vmatprep.subr.mxu0 0.0
      %730 = vmatpush2.msra.mxu0 0.0
      %731 = vmatprep.subr.mxu0 0.0
      %732 = vmatpush2.msra.mxu0 0.0
      %733 = vmatprep.subr.mxu0 0.0
      %734 = vmatpush2.msra.mxu0 0.0
      %735 = vmatprep.subr.mxu0 0.0
      %736 = vmatpush2.msra.mxu0 0.0
      %737 = vmatprep.subr.mxu0 0.0
      %738 = vmatpush2.msra.mxu0 0.0
      %739 = vmatprep.subr.mxu0 0.0
      %740 = vmatpush2.msra.mxu0 0.0
      %741 = vmatprep.subr.mxu0 0.0
      %742 = vmatpush2.msra.mxu0 0.0
      %743 = vmatprep.subr.mxu0 0.0
      %744 = vmatpush2.msra.mxu0 0.0
      %745 = vmatprep.subr.mxu0 0.0
      %746 = vmatpush2.msra.mxu0 0.0
      %747 = vmatprep.mubr.f32.mxu0 0.0
      %748 = vmatmul.mubr.f32.gmra.mxu0 %v616
      %v749 = vpop.f32.mrf.mxu0
      %v750 = vadd.f32 0.0, %v749
      %v751 = vpop.f32.mrf.mxu0
      %752 = vdwg.mxu0
      %753 = vmatprep.subr.mxu0 0.0
      %754 = vmatpush1.msra.mxu0 %v650
      %755 = vmatprep.subr.mxu0 0.0
      %756 = vmatpush1.msra.mxu0 %v649
      %757 = vmatprep.subr.mxu0 0.0
      %758 = vmatpush1.msra.mxu0 %v648
      %759 = vmatprep.subr.mxu0 0.0
      %760 = vmatpush1.msra.mxu0 %v647
      %761 = vmatprep.subr.mxu0 0.0
      %762 = vmatpush1.msra.mxu0 %v646
      %763 = vmatprep.subr.mxu0 0.0
      %764 = vmatpush1.msra.mxu0 %v645
      %765 = vmatprep.subr.mxu0 0.0
      %766 = vmatpush1.msra.mxu0 %v644
      %767 = vmatprep.subr.mxu0 0.0
      %768 = vmatpush1.msra.mxu0 %v643
      %769 = vmatprep.subr.mxu0 0.0
      %770 = vmatpush1.msra.mxu0 %v642
      %771 = vmatprep.subr.mxu0 0.0
      %772 = vmatpush1.msra.mxu0 %v641
      %773 = vmatprep.subr.mxu0 0.0
      %774 = vmatpush1.msra.mxu0 %v640
      %775 = vmatprep.subr.mxu0 0.0
      %776 = vmatpush1.msra.mxu0 %v639
      %777 = vmatprep.subr.mxu0 0.0
      %778 = vmatpush1.msra.mxu0 %v638
      %779 = vmatprep.subr.mxu0 0.0
      %780 = vmatpush1.msra.mxu0 %v637
      %781 = vmatprep.subr.mxu0 0.0
      %782 = vmatpush1.msra.mxu0 %v636
      %783 = vmatprep.subr.mxu0 0.0
      %784 = vmatpush1.msra.mxu0 %v635
      %785 = vmatprep.subr.mxu0 0.0
      %786 = vmatpush2.msra.mxu0 0.0
      %787 = vmatprep.subr.mxu0 0.0
      %788 = vmatpush2.msra.mxu0 0.0
      %789 = vmatprep.subr.mxu0 0.0
      %790 = vmatpush2.msra.mxu0 0.0
      %791 = vmatprep.subr.mxu0 0.0
      %792 = vmatpush2.msra.mxu0 0.0
      %793 = vmatprep.subr.mxu0 0.0
      %794 = vmatpush2.msra.mxu0 0.0
      %795 = vmatprep.subr.mxu0 0.0
      %796 = vmatpush2.msra.mxu0 0.0
      %797 = vmatprep.subr.mxu0 0.0
      %798 = vmatpush2.msra.mxu0 0.0
      %799 = vmatprep.subr.mxu0 0.0
      %800 = vmatpush2.msra.mxu0 0.0
      %801 = vmatprep.subr.mxu0 0.0
      %802 = vmatpush2.msra.mxu0 0.0
      %803 = vmatprep.subr.mxu0 0.0
      %804 = vmatpush2.msra.mxu0 0.0
      %805 = vmatprep.subr.mxu0 0.0
      %806 = vmatpush2.msra.mxu0 0.0
      %807 = vmatprep.subr.mxu0 0.0
      %808 = vmatpush2.msra.mxu0 0.0
      %809 = vmatprep.subr.mxu0 0.0
      %810 = vmatpush2.msra.mxu0 0.0
      %811 = vmatprep.subr.mxu0 0.0
      %812 = vmatpush2.msra.mxu0 0.0
      %813 = vmatprep.subr.mxu0 0.0
      %814 = vmatpush2.msra.mxu0 0.0
      %815 = vmatprep.subr.mxu0 0.0
      %816 = vmatpush2.msra.mxu0 0.0
      %817 = vmatprep.mubr.f32.mxu0 0.0
      %818 = vmatmul.mubr.f32.gmra.mxu0 %v123
      %v819 = vpop.f32.mrf.mxu0
      %v820 = vadd.f32 %v750, %v819
      %v821 = vpop.f32.mrf.mxu0
      %822 = vdwg.mxu0
      %v823 = vtanh.pop %v820
      %v824 = vld [vmem:[#allocation10] sm:$0xf]
      %v825 = vld [vmem:[#allocation10 + $0x4] sm:$0xf]
      %v826 = vld [vmem:[#allocation10 + $0x8] sm:$0xf]
      %v827 = vld [vmem:[#allocation10 + $0xc] sm:$0xf]
      %v828 = vld [vmem:[#allocation10 + $0x10] sm:$0xf]
      %v829 = vld [vmem:[#allocation10 + $0x14] sm:$0xf]
      %v830 = vld [vmem:[#allocation10 + $0x18] sm:$0xf]
      %v831 = vld [vmem:[#allocation10 + $0x1c] sm:$0xf]
      %v832 = vld [vmem:[#allocation10 + $0x20] sm:$0xf]
      %v833 = vld [vmem:[#allocation10 + $0x24] sm:$0xf]
      %v834 = vld [vmem:[#allocation10 + $0x28] sm:$0xf]
      %v835 = vld [vmem:[#allocation10 + $0x2c] sm:$0xf]
      %v836 = vld [vmem:[#allocation10 + $0x30] sm:$0xf]
      %v837 = vld [vmem:[#allocation10 + $0x34] sm:$0xf]
      %v838 = vld [vmem:[#allocation10 + $0x38] sm:$0xf]
      %v839 = vld [vmem:[#allocation10 + $0x3c] sm:$0xf]
      %v840 = vunpack.c.l.bf16 %v824
      %v841 = vunpack.c.l.bf16 %v825
      %v842 = vunpack.c.l.bf16 %v826
      %v843 = vunpack.c.l.bf16 %v827
      %v844 = vunpack.c.l.bf16 %v828
      %v845 = vunpack.c.l.bf16 %v829
      %v846 = vunpack.c.l.bf16 %v830
      %v847 = vunpack.c.l.bf16 %v831
      %v848 = vunpack.c.l.bf16 %v832
      %v849 = vunpack.c.l.bf16 %v833
      %v850 = vunpack.c.l.bf16 %v834
      %v851 = vunpack.c.l.bf16 %v835
      %v852 = vunpack.c.l.bf16 %v836
      %v853 = vunpack.c.l.bf16 %v837
      %v854 = vunpack.c.l.bf16 %v838
      %v855 = vunpack.c.l.bf16 %v839
      %856 = vmatprep.subr.mxu0 0.0
      %857 = vmatpush1.msra.mxu0 %v855
      %858 = vmatprep.subr.mxu0 0.0
      %859 = vmatpush1.msra.mxu0 %v854
      %860 = vmatprep.subr.mxu0 0.0
      %861 = vmatpush1.msra.mxu0 %v853
      %862 = vmatprep.subr.mxu0 0.0
      %863 = vmatpush1.msra.mxu0 %v852
      %864 = vmatprep.subr.mxu0 0.0
      %865 = vmatpush1.msra.mxu0 %v851
      %866 = vmatprep.subr.mxu0 0.0
      %867 = vmatpush1.msra.mxu0 %v850
      %868 = vmatprep.subr.mxu0 0.0
      %869 = vmatpush1.msra.mxu0 %v849
      %870 = vmatprep.subr.mxu0 0.0
      %871 = vmatpush1.msra.mxu0 %v848
      %872 = vmatprep.subr.mxu0 0.0
      %873 = vmatpush1.msra.mxu0 %v847
      %874 = vmatprep.subr.mxu0 0.0
      %875 = vmatpush1.msra.mxu0 %v846
      %876 = vmatprep.subr.mxu0 0.0
      %877 = vmatpush1.msra.mxu0 %v845
      %878 = vmatprep.subr.mxu0 0.0
      %879 = vmatpush1.msra.mxu0 %v844
      %880 = vmatprep.subr.mxu0 0.0
      %881 = vmatpush1.msra.mxu0 %v843
      %882 = vmatprep.subr.mxu0 0.0
      %883 = vmatpush1.msra.mxu0 %v842
      %884 = vmatprep.subr.mxu0 0.0
      %885 = vmatpush1.msra.mxu0 %v841
      %886 = vmatprep.subr.mxu0 0.0
      %887 = vmatpush1.msra.mxu0 %v840
      %888 = vmatprep.subr.mxu0 0.0
      %889 = vmatpush2.msra.mxu0 0.0
      %890 = vmatprep.subr.mxu0 0.0
      %891 = vmatpush2.msra.mxu0 0.0
      %892 = vmatprep.subr.mxu0 0.0
      %893 = vmatpush2.msra.mxu0 0.0
      %894 = vmatprep.subr.mxu0 0.0
      %895 = vmatpush2.msra.mxu0 0.0
      %896 = vmatprep.subr.mxu0 0.0
      %897 = vmatpush2.msra.mxu0 0.0
      %898 = vmatprep.subr.mxu0 0.0
      %899 = vmatpush2.msra.mxu0 0.0
      %900 = vmatprep.subr.mxu0 0.0
      %901 = vmatpush2.msra.mxu0 0.0
      %902 = vmatprep.subr.mxu0 0.0
      %903 = vmatpush2.msra.mxu0 0.0
      %904 = vmatprep.subr.mxu0 0.0
      %905 = vmatpush2.msra.mxu0 0.0
      %906 = vmatprep.subr.mxu0 0.0
      %907 = vmatpush2.msra.mxu0 0.0
      %908 = vmatprep.subr.mxu0 0.0
      %909 = vmatpush2.msra.mxu0 0.0
      %910 = vmatprep.subr.mxu0 0.0
      %911 = vmatpush2.msra.mxu0 0.0
      %912 = vmatprep.subr.mxu0 0.0
      %913 = vmatpush2.msra.mxu0 0.0
      %914 = vmatprep.subr.mxu0 0.0
      %915 = vmatpush2.msra.mxu0 0.0
      %916 = vmatprep.subr.mxu0 0.0
      %917 = vmatpush2.msra.mxu0 0.0
      %918 = vmatprep.subr.mxu0 0.0
      %919 = vmatpush2.msra.mxu0 0.0
      %920 = vmatprep.mubr.f32.mxu0 0.0
      %921 = vmatmul.mubr.f32.gmra.mxu0 %v823
      %v922 = vpop.f32.mrf.mxu0
      %v923 = vadd.f32 0.0, %v922
      %v924 = vpop.f32.mrf.mxu0
      %925 = vdwg.mxu0
      %v926 = vld [vmem:[%s9] sm:$0xf]
      %v927 = vld [vmem:[%s9 + $0x4] sm:$0xf]
      %v928 = vld [vmem:[%s9 + $0x8] sm:$0xf]
      %v929 = vld [vmem:[%s9 + $0xc] sm:$0xf]
      %v930 = vld [vmem:[%s9 + $0x10] sm:$0xf]
      %v931 = vld [vmem:[%s9 + $0x14] sm:$0xf]
      %v932 = vld [vmem:[%s9 + $0x18] sm:$0xf]
      %v933 = vld [vmem:[%s9 + $0x1c] sm:$0xf]
      %v934 = vld [vmem:[%s9 + $0x20] sm:$0xf]
      %v935 = vld [vmem:[%s9 + $0x24] sm:$0xf]
      %v936 = vld [vmem:[%s9 + $0x28] sm:$0xf]
      %v937 = vld [vmem:[%s9 + $0x2c] sm:$0xf]
      %v938 = vld [vmem:[%s9 + $0x30] sm:$0xf]
      %v939 = vld [vmem:[%s9 + $0x34] sm:$0xf]
      %v940 = vld [vmem:[%s9 + $0x38] sm:$0xf]
      %v941 = vld [vmem:[%s9 + $0x3c] sm:$0xf]
      %v942 = vunpack.c.l.bf16 %v926
      %v943 = vunpack.c.l.bf16 %v927
      %v944 = vunpack.c.l.bf16 %v928
      %v945 = vunpack.c.l.bf16 %v929
      %v946 = vunpack.c.l.bf16 %v930
      %v947 = vunpack.c.l.bf16 %v931
      %v948 = vunpack.c.l.bf16 %v932
      %v949 = vunpack.c.l.bf16 %v933
      %v950 = vunpack.c.l.bf16 %v934
      %v951 = vunpack.c.l.bf16 %v935
      %v952 = vunpack.c.l.bf16 %v936
      %v953 = vunpack.c.l.bf16 %v937
      %v954 = vunpack.c.l.bf16 %v938
      %v955 = vunpack.c.l.bf16 %v939
      %v956 = vunpack.c.l.bf16 %v940
      %v957 = vunpack.c.l.bf16 %v941
      %v958 = vlaneseq
      %v959 = vshrl.u32 %v958, 7
      %v960 = vadd.s32 %v959, 8
      %v961 = vadd.s32 %v959, 16
      %v962 = vadd.s32 %v959, 24
      %v963 = vadd.s32 %v959, 32
      %v964 = vadd.s32 %v959, 40
      %v965 = vadd.s32 %v959, 48
      %v966 = vadd.s32 %v959, 56
      %v967 = vadd.s32 %v959, 64
      %v968 = vadd.s32 %v959, 72
      %v969 = vadd.s32 %v959, 80
      %v970 = vadd.s32 %v959, 88
      %v971 = vadd.s32 %v959, 96
      %v972 = vadd.s32 %v959, 104
      %v973 = vadd.s32 %v959, 112
      %v974 = vadd.s32 %v959, 120
      %v975 = vld [vmem:[%s10] sm:$0x1]
      %v976 = vlaneseq
      %v977 = vshrl.u32 %v976, 7
      %v978 = vsub.s32 0, %v977
      %v979 = vrot.slane %v975, %v978
      %vm980 = vcmp.eq.s32.totalorder %v959, %v979
      %vm981 = vcmp.eq.s32.totalorder %v960, %v979
      %vm982 = vcmp.eq.s32.totalorder %v961, %v979
      %vm983 = vcmp.eq.s32.totalorder %v962, %v979
      %vm984 = vcmp.eq.s32.totalorder %v963, %v979
      %vm985 = vcmp.eq.s32.totalorder %v964, %v979
      %vm986 = vcmp.eq.s32.totalorder %v965, %v979
      %vm987 = vcmp.eq.s32.totalorder %v966, %v979
      %vm988 = vcmp.eq.s32.totalorder %v967, %v979
      %vm989 = vcmp.eq.s32.totalorder %v968, %v979
      %vm990 = vcmp.eq.s32.totalorder %v969, %v979
      %vm991 = vcmp.eq.s32.totalorder %v970, %v979
      %vm992 = vcmp.eq.s32.totalorder %v971, %v979
      %vm993 = vcmp.eq.s32.totalorder %v972, %v979
      %vm994 = vcmp.eq.s32.totalorder %v973, %v979
      %vm995 = vcmp.eq.s32.totalorder %v974, %v979
      %v996 = vsel %vm980, 1, 0
      %v997 = vsel %vm981, 1, 0
      %v998 = vsel %vm982, 1, 0
      %v999 = vsel %vm983, 1, 0
      %v1000 = vsel %vm984, 1, 0
      %v1001 = vsel %vm985, 1, 0
      %v1002 = vsel %vm986, 1, 0
      %v1003 = vsel %vm987, 1, 0
      %v1004 = vsel %vm988, 1, 0
      %v1005 = vsel %vm989, 1, 0
      %v1006 = vsel %vm990, 1, 0
      %v1007 = vsel %vm991, 1, 0
      %v1008 = vsel %vm992, 1, 0
      %v1009 = vsel %vm993, 1, 0
      %v1010 = vsel %vm994, 1, 0
      %v1011 = vsel %vm995, 1, 0
      %v1012 = vcvt.s32.f32 %v996
      %v1013 = vcvt.s32.f32 %v997
      %v1014 = vcvt.s32.f32 %v998
      %v1015 = vcvt.s32.f32 %v999
      %v1016 = vcvt.s32.f32 %v1000
      %v1017 = vcvt.s32.f32 %v1001
      %v1018 = vcvt.s32.f32 %v1002
      %v1019 = vcvt.s32.f32 %v1003
      %v1020 = vcvt.s32.f32 %v1004
      %v1021 = vcvt.s32.f32 %v1005
      %v1022 = vcvt.s32.f32 %v1006
      %v1023 = vcvt.s32.f32 %v1007
      %v1024 = vcvt.s32.f32 %v1008
      %v1025 = vcvt.s32.f32 %v1009
      %v1026 = vcvt.s32.f32 %v1010
      %v1027 = vcvt.s32.f32 %v1011
      %1028 = vmatprep.subr.mxu0 0.0
      %1029 = vmatpush1.msra.mxu0 %v1027
      %1030 = vmatprep.subr.mxu0 0.0
      %1031 = vmatpush1.msra.mxu0 %v1026
      %1032 = vmatprep.subr.mxu0 0.0
      %1033 = vmatpush1.msra.mxu0 %v1025
      %1034 = vmatprep.subr.mxu0 0.0
      %1035 = vmatpush1.msra.mxu0 %v1024
      %1036 = vmatprep.subr.mxu0 0.0
      %1037 = vmatpush1.msra.mxu0 %v1023
      %1038 = vmatprep.subr.mxu0 0.0
      %1039 = vmatpush1.msra.mxu0 %v1022
      %1040 = vmatprep.subr.mxu0 0.0
      %1041 = vmatpush1.msra.mxu0 %v1021
      %1042 = vmatprep.subr.mxu0 0.0
      %1043 = vmatpush1.msra.mxu0 %v1020
      %1044 = vmatprep.subr.mxu0 0.0
      %1045 = vmatpush1.msra.mxu0 %v1019
      %1046 = vmatprep.subr.mxu0 0.0
      %1047 = vmatpush1.msra.mxu0 %v1018
      %1048 = vmatprep.subr.mxu0 0.0
      %1049 = vmatpush1.msra.mxu0 %v1017
      %1050 = vmatprep.subr.mxu0 0.0
      %1051 = vmatpush1.msra.mxu0 %v1016
      %1052 = vmatprep.subr.mxu0 0.0
      %1053 = vmatpush1.msra.mxu0 %v1015
      %1054 = vmatprep.subr.mxu0 0.0
      %1055 = vmatpush1.msra.mxu0 %v1014
      %1056 = vmatprep.subr.mxu0 0.0
      %1057 = vmatpush1.msra.mxu0 %v1013
      %1058 = vmatprep.subr.mxu0 0.0
      %1059 = vmatpush1.msra.mxu0 %v1012
      %1060 = vmatprep.subr.mxu0 0.0
      %1061 = vmatpush2.msra.mxu0 0.0
      %1062 = vmatprep.subr.mxu0 0.0
      %1063 = vmatpush2.msra.mxu0 0.0
      %1064 = vmatprep.subr.mxu0 0.0
      %1065 = vmatpush2.msra.mxu0 0.0
      %1066 = vmatprep.subr.mxu0 0.0
      %1067 = vmatpush2.msra.mxu0 0.0
      %1068 = vmatprep.subr.mxu0 0.0
      %1069 = vmatpush2.msra.mxu0 0.0
      %1070 = vmatprep.subr.mxu0 0.0
      %1071 = vmatpush2.msra.mxu0 0.0
      %1072 = vmatprep.subr.mxu0 0.0
      %1073 = vmatpush2.msra.mxu0 0.0
      %1074 = vmatprep.subr.mxu0 0.0
      %1075 = vmatpush2.msra.mxu0 0.0
      %1076 = vmatprep.subr.mxu0 0.0
      %1077 = vmatpush2.msra.mxu0 0.0
      %1078 = vmatprep.subr.mxu0 0.0
      %1079 = vmatpush2.msra.mxu0 0.0
      %1080 = vmatprep.subr.mxu0 0.0
      %1081 = vmatpush2.msra.mxu0 0.0
      %1082 = vmatprep.subr.mxu0 0.0
      %1083 = vmatpush2.msra.mxu0 0.0
      %1084 = vmatprep.subr.mxu0 0.0
      %1085 = vmatpush2.msra.mxu0 0.0
      %1086 = vmatprep.subr.mxu0 0.0
      %1087 = vmatpush2.msra.mxu0 0.0
      %1088 = vmatprep.subr.mxu0 0.0
      %1089 = vmatpush2.msra.mxu0 0.0
      %1090 = vmatprep.subr.mxu0 0.0
      %1091 = vmatpush2.msra.mxu0 0.0
      %1092 = vmatprep.mubr.f32.mxu0 0.0
      %1093 = vmatmul.mubr.f32.gmra.mxu0 %v434
      %v1094 = vpop.f32.mrf.mxu0
      %v1095 = vadd.f32 0.0, %v1094
      %v1096 = vpop.f32.mrf.mxu0
      %1097 = vdwg.mxu0
      %1098 = vmatprep.subr.mxu0 0.0
      %1099 = vmatpush1.msra.mxu0 %v957
      %1100 = vmatprep.subr.mxu0 0.0
      %1101 = vmatpush1.msra.mxu0 %v956
      %1102 = vmatprep.subr.mxu0 0.0
      %1103 = vmatpush1.msra.mxu0 %v955
      %1104 = vmatprep.subr.mxu0 0.0
      %1105 = vmatpush1.msra.mxu0 %v954
      %1106 = vmatprep.subr.mxu0 0.0
      %1107 = vmatpush1.msra.mxu0 %v953
      %1108 = vmatprep.subr.mxu0 0.0
      %1109 = vmatpush1.msra.mxu0 %v952
      %1110 = vmatprep.subr.mxu0 0.0
      %1111 = vmatpush1.msra.mxu0 %v951
      %1112 = vmatprep.subr.mxu0 0.0
      %1113 = vmatpush1.msra.mxu0 %v950
      %1114 = vmatprep.subr.mxu0 0.0
      %1115 = vmatpush1.msra.mxu0 %v949
      %1116 = vmatprep.subr.mxu0 0.0
      %1117 = vmatpush1.msra.mxu0 %v948
      %1118 = vmatprep.subr.mxu0 0.0
      %1119 = vmatpush1.msra.mxu0 %v947
      %1120 = vmatprep.subr.mxu0 0.0
      %1121 = vmatpush1.msra.mxu0 %v946
      %1122 = vmatprep.subr.mxu0 0.0
      %1123 = vmatpush1.msra.mxu0 %v945
      %1124 = vmatprep.subr.mxu0 0.0
      %1125 = vmatpush1.msra.mxu0 %v944
      %1126 = vmatprep.subr.mxu0 0.0
      %1127 = vmatpush1.msra.mxu0 %v943
      %1128 = vmatprep.subr.mxu0 0.0
      %1129 = vmatpush1.msra.mxu0 %v942
      %1130 = vmatprep.subr.mxu0 0.0
      %1131 = vmatpush2.msra.mxu0 0.0
      %1132 = vmatprep.subr.mxu0 0.0
      %1133 = vmatpush2.msra.mxu0 0.0
      %1134 = vmatprep.subr.mxu0 0.0
      %1135 = vmatpush2.msra.mxu0 0.0
      %1136 = vmatprep.subr.mxu0 0.0
      %1137 = vmatpush2.msra.mxu0 0.0
      %1138 = vmatprep.subr.mxu0 0.0
      %1139 = vmatpush2.msra.mxu0 0.0
      %1140 = vmatprep.subr.mxu0 0.0
      %1141 = vmatpush2.msra.mxu0 0.0
      %1142 = vmatprep.subr.mxu0 0.0
      %1143 = vmatpush2.msra.mxu0 0.0
      %1144 = vmatprep.subr.mxu0 0.0
      %1145 = vmatpush2.msra.mxu0 0.0
      %1146 = vmatprep.subr.mxu0 0.0
      %1147 = vmatpush2.msra.mxu0 0.0
      %1148 = vmatprep.subr.mxu0 0.0
      %1149 = vmatpush2.msra.mxu0 0.0
      %1150 = vmatprep.subr.mxu0 0.0
      %1151 = vmatpush2.msra.mxu0 0.0
      %1152 = vmatprep.subr.mxu0 0.0
      %1153 = vmatpush2.msra.mxu0 0.0
      %1154 = vmatprep.subr.mxu0 0.0
      %1155 = vmatpush2.msra.mxu0 0.0
      %1156 = vmatprep.subr.mxu0 0.0
      %1157 = vmatpush2.msra.mxu0 0.0
      %1158 = vmatprep.subr.mxu0 0.0
      %1159 = vmatpush2.msra.mxu0 0.0
      %1160 = vmatprep.subr.mxu0 0.0
      %1161 = vmatpush2.msra.mxu0 0.0
      %1162 = vmatprep.mubr.f32.mxu0 0.0
      %1163 = vmatmul.mubr.f32.gmra.mxu0 %v923
      %v1164 = vpop.f32.mrf.mxu0
      %v1165 = vadd.f32 %v1095, %v1164
      %v1166 = vpop.f32.mrf.mxu0
      %1167 = vdwg.mxu0
      %1168 = vst [vmem:[%s14] sm:$0x1] %v434
      %1169 = vst [vmem:[%s15] sm:$0x1] %v446
      %1170 = vst [vmem:[%s16] sm:$0x1] %v616
      %1171 = vst [vmem:[%s17] sm:$0x1] %v1165
      %v1172 = vpack.c.bf16 %v823, %v823
      %vm1173 = vcmask 1040384
      %vm1174 = vsmask.f32 256
      %vm1175 = vmand %vm1173, %vm1174
      %v1176 = vld [vmem:[#allocation2] sm:$0x1]
      %v1177 = vsel %vm1175, %v1172, %v1176
      %1178 = vst [vmem:[#allocation2] sm:$0x1] %v1177
    $region73: #{_forward_impl.1} parent=1 // pred_fallthru
      _
    %v1179 = vld [vmem:[#allocation2] sm:$0x1]
    %v1180 = vld [vmem:[#allocation12] sm:$0xf]
    %v1181 = vld [vmem:[#allocation12 + $0x4] sm:$0xf]
    %v1182 = vld [vmem:[#allocation12 + $0x8] sm:$0xf]
    %v1183 = vld [vmem:[#allocation12 + $0xc] sm:$0xf]
    %v1184 = vld [vmem:[#allocation12 + $0x10] sm:$0xf]
    %v1185 = vld [vmem:[#allocation12 + $0x14] sm:$0xf]
    %v1186 = vld [vmem:[#allocation12 + $0x18] sm:$0xf]
    %v1187 = vld [vmem:[#allocation12 + $0x1c] sm:$0xf]
    %v1188 = vld [vmem:[#allocation12 + $0x20] sm:$0xf]
    %v1189 = vld [vmem:[#allocation12 + $0x24] sm:$0xf]
    %v1190 = vld [vmem:[#allocation12 + $0x28] sm:$0xf]
    %v1191 = vld [vmem:[#allocation12 + $0x2c] sm:$0xf]
    %v1192 = vld [vmem:[#allocation12 + $0x30] sm:$0xf]
    %v1193 = vld [vmem:[#allocation12 + $0x34] sm:$0xf]
    %v1194 = vld [vmem:[#allocation12 + $0x38] sm:$0xf]
    %v1195 = vld [vmem:[#allocation12 + $0x3c] sm:$0xf]
    %v1196 = vld [vmem:[%s12] sm:$0x1]
    %v1213 = vunpack.c.l.b16 %v1180
    %v1214 = vunpack.c.l.b16 %v1181
    %v1215 = vunpack.c.l.b16 %v1182
    %v1216 = vunpack.c.l.b16 %v1183
    %v1217 = vunpack.c.l.b16 %v1184
    %v1218 = vunpack.c.l.b16 %v1185
    %v1219 = vunpack.c.l.b16 %v1186
    %v1220 = vunpack.c.l.b16 %v1187
    %v1221 = vunpack.c.l.b16 %v1188
    %v1222 = vunpack.c.l.b16 %v1189
    %v1223 = vunpack.c.l.b16 %v1190
    %v1224 = vunpack.c.l.b16 %v1191
    %v1225 = vunpack.c.l.b16 %v1192
    %v1226 = vunpack.c.l.b16 %v1193
    %v1227 = vunpack.c.l.b16 %v1194
    %v1228 = vunpack.c.l.b16 %v1195
    %v1229 = vpack.c.b16 %v1214, %v1213
    %v1230 = vpack.c.b16 %v1216, %v1215
    %v1231 = vpack.c.b16 %v1218, %v1217
    %v1232 = vpack.c.b16 %v1220, %v1219
    %v1233 = vpack.c.b16 %v1222, %v1221
    %v1234 = vpack.c.b16 %v1224, %v1223
    %v1235 = vpack.c.b16 %v1226, %v1225
    %v1236 = vpack.c.b16 %v1228, %v1227
    %1245 = vmatprep.subr.bf16.mxu0 0
    %1246 = vmatpush1.bf16.msra.mxu0 %v1236
    %1247 = vmatprep.subr.bf16.mxu0 0
    %1248 = vmatpush1.bf16.msra.mxu0 %v1235
    %1249 = vmatprep.subr.bf16.mxu0 0
    %1250 = vmatpush1.bf16.msra.mxu0 %v1234
    %1251 = vmatprep.subr.bf16.mxu0 0
    %1252 = vmatpush1.bf16.msra.mxu0 %v1233
    %1253 = vmatprep.subr.bf16.mxu0 0
    %1254 = vmatpush1.bf16.msra.mxu0 %v1232
    %1255 = vmatprep.subr.bf16.mxu0 0
    %1256 = vmatpush1.bf16.msra.mxu0 %v1231
    %1257 = vmatprep.subr.bf16.mxu0 0
    %1258 = vmatpush1.bf16.msra.mxu0 %v1230
    %1259 = vmatprep.subr.bf16.mxu0 0
    %1260 = vmatpush1.bf16.msra.mxu0 %v1229
    %1261 = vmatprep.subr.bf16.mxu0 0
    %1262 = vmatpush2.bf16.msra.mxu0 0
    %1263 = vmatprep.subr.bf16.mxu0 0
    %1264 = vmatpush2.bf16.msra.mxu0 0
    %1265 = vmatprep.subr.bf16.mxu0 0
    %1266 = vmatpush2.bf16.msra.mxu0 0
    %1267 = vmatprep.subr.bf16.mxu0 0
    %1268 = vmatpush2.bf16.msra.mxu0 0
    %1269 = vmatprep.subr.bf16.mxu0 0
    %1270 = vmatpush2.bf16.msra.mxu0 0
    %1271 = vmatprep.subr.bf16.mxu0 0
    %1272 = vmatpush2.bf16.msra.mxu0 0
    %1273 = vmatprep.subr.bf16.mxu0 0
    %1274 = vmatpush2.bf16.msra.mxu0 0
    %1275 = vmatprep.subr.bf16.mxu0 0
    %1276 = vmatpush2.bf16.msra.mxu0 0
    %1277 = vmatprep.mubr.bf16.mxu0 0
    %1278 = vmatmul.mubr.bf16.gmra.mxu0 %v1179
    %v1279 = vpop.f32.mrf.mxu0
    %v1280 = vadd.f32 %v1196, %v1279
    %v1281 = vpop.f32.mrf.mxu0
    %v1282 = vpop.f32.mrf.mxu0
    %v1283 = vpop.f32.mrf.mxu0
    %1284 = vdwg.mxu0
    %1285 = vst [vmem:[%s13] sm:$0x1] %v1280
    // Predicated region
    $region74: #{_forward_impl.1} parent=1 // pred_check
      _
    $region75: #{_forward_impl.1} parent=1 // pred_check_branch
      %1287 = sbr.rel (0) target = $region77
    $region76: #{_forward_impl.1} parent=1 // pred_region
      _
    $region77: #{_forward_impl.1} parent=1 // pred_fallthru
      _
    // Predicated region
    $region78: #{_forward_impl.1} parent=1 // pred_check
      _
    $region79: #{_forward_impl.1} parent=1 // pred_check_branch
      %1289 = sbr.rel (0) target = $region81
    $region80: #{_forward_impl.1} parent=1 // pred_region
      _
    $region81: #{_forward_impl.1} parent=1 // pred_fallthru
      _
    // Predicated region
    $region82: #{_forward_impl.1} parent=1 // pred_check
      _
    $region83: #{_forward_impl.1} parent=1 // pred_check_branch
      %1291 = sbr.rel (0) target = $region85
    $region84: #{_forward_impl.1} parent=1 // pred_region
      _
    $region85: #{_forward_impl.1} parent=1 // pred_fallthru
      _
    // Predicated region
    $region86: #{_forward_impl.1} parent=1 // pred_check
      _
    $region87: #{_forward_impl.1} parent=1 // pred_check_branch
      %1293 = sbr.rel (0) target = $region89
    $region88: #{_forward_impl.1} parent=1 // pred_region
      _
    $region89: #{_forward_impl.1} parent=1 // pred_fallthru
      _
    // Predicated region
    $region90: #{_forward_impl.1} parent=1 // pred_check
      _
    $region91: #{_forward_impl.1} parent=1 // pred_check_branch
      %1295 = sbr.rel (0) target = $region93
    $region92: #{_forward_impl.1} parent=1 // pred_region
      _
    $region93: #{_forward_impl.1} parent=1 // pred_fallthru
      _
    // Predicated region
    $region94: #{_forward_impl.1} parent=1 // pred_check
      _
    $region95: #{_forward_impl.1} parent=1 // pred_check_branch
      %1297 = sbr.rel (0) target = $region97
    $region96: #{_forward_impl.1} parent=1 // pred_region
      _
    $region97: #{_forward_impl.1} parent=1 // pred_fallthru
      _
    // Predicated region
    $region98: #{_forward_impl.1} parent=1 // pred_check
      _
    $region99: #{_forward_impl.1} parent=1 // pred_check_branch
      %1299 = sbr.rel (0) target = $region101
    $region100: #{_forward_impl.1} parent=1 // pred_region
      _
    $region101: #{_forward_impl.1} parent=1 // pred_fallthru
      _
    // Predicated region
    $region102: #{_forward_impl.1} parent=1 // pred_check
      _
    $region103: #{_forward_impl.1} parent=1 // pred_check_branch
      %1301 = sbr.rel (0) target = $region105
    $region104: #{_forward_impl.1} parent=1 // pred_region
      _
    $region105: #{_forward_impl.1} parent=1 // pred_fallthru
      _
    // Predicated region
    $region106: #{_forward_impl.1} parent=1 // pred_check
      _
    $region107: #{_forward_impl.1} parent=1 // pred_check_branch
      %1303 = sbr.rel (0) target = $region109
    $region108: #{_forward_impl.1} parent=1 // pred_region
      _
    $region109: #{_forward_impl.1} parent=1 // pred_fallthru
      _
    // Predicated region
    $region110: #{_forward_impl.1} parent=1 // pred_check
      _
    $region111: #{_forward_impl.1} parent=1 // pred_check_branch
      %1305 = sbr.rel (0) target = $region113
    $region112: #{_forward_impl.1} parent=1 // pred_region
      _
    $region113: #{_forward_impl.1} parent=1 // pred_fallthru
      _
    %1306 = vsyncpa [#allocation6], 1
    %1307 = vsyncpa [#allocation8], 1
    %1308 = vsyncpa [#allocation11], 1

</llo_original>
